<compile_context>
chip_gen: v7x
topology: tpu7x:2x2x1
jax: 0.10.0
libtpu: 0.0.40
codegen_flags: <defaults>
</compile_context>

<pallas_src>
import functools

import jax
import jax.numpy as jnp
from jax.experimental import pallas as pl
from jax.experimental.pallas import tpu as pltpu


# ----------------------------------------------------------------------------
# Pallas kernel factory: fused (multi-part matmul, bias, tanh) for mu|sigma,
# reparameterization with streamed noise, per-tile KL lane partials.
# ----------------------------------------------------------------------------
def _make_conv_reparam_kernel(n_parts, num_f, m_true, tile_m, m_pad,
                              noise_std):
    needs_mask = (m_pad != m_true)   # static: no mask ops when M fits exactly

    def kernel(*refs):
        xs = refs[:n_parts]                 # [K_p, TILE_M] bf16 (per-tile)
        ws = refs[n_parts:2 * n_parts]      # [2F, K_p]     bf16 (resident)
        b_ref = refs[2 * n_parts]           # [2F, 1]       f32  (resident)
        noise_ref = refs[2 * n_parts + 1]   # [F, TILE_M]   f32  (per-tile)
        out_ref = refs[2 * n_parts + 2]     # [F, TILE_M]   f32  (per-tile)
        kl_ref = refs[2 * n_parts + 3]      # [1, 1, TILE_M] f32 (per-tile)

        # Fused mu|sigma matmul, accumulated over input parts (split-K conv).
        z = jnp.dot(ws[0][...], xs[0][...], preferred_element_type=jnp.float32)
        for p in range(1, n_parts):
            z = z + jnp.dot(ws[p][...], xs[p][...],
                            preferred_element_type=jnp.float32)
        z = z + b_ref[...]                  # lane-broadcast of [2F, 1]

        mu = jnp.tanh(z[:num_f, :])
        sg = jnp.tanh(z[num_f:, :])
        e = jnp.exp(0.5 * sg)               # exp(logvar/2); reused as e*e

        # Reparameterization with streamed unit-normal noise (scale = 0.1).
        out_ref[...] = mu + e * (noise_std * noise_ref[...])

        # KL contribution: 1 + logvar - mu^2 - exp(logvar).
        term = 1.0 + sg - mu * mu - e * e
        if needs_mask:
            col = (jax.lax.broadcasted_iota(jnp.int32, (num_f, tile_m), 1)
                   + pl.program_id(0) * tile_m)
            term = jnp.where(col < m_true, term, 0.0)
        # Sublane-only reduction; cross-lane sum happens outside the kernel.
        kl_ref[...] = jnp.sum(term, axis=0, keepdims=True).reshape(
            1, 1, tile_m)

    return kernel


def fused_conv_reparam(parts, w_parts, b_cat, noise, *, tile_m=512,
                       noise_std=0.1):
    """parts[p]: [K_p, M]  w_parts[p]: [2F, K_p]  b_cat: [2F, 1]
    noise: [F, M] unit-normal.

    Returns (out [F, M] f32, kl scalar) with kl = -0.5*mean(1+sg-mu^2-exp(sg)).
    """
    two_f = b_cat.shape[0]
    num_f = two_f // 2
    m_true = parts[0].shape[1]
    # Lane-aligned tile; avoid gross over-padding for small inputs.
    tile_m = min(tile_m, ((m_true + 127) // 128) * 128)
    grid_m = pl.cdiv(m_true, tile_m)
    m_pad = grid_m * tile_m

    # bf16 operands for the MXU / halved DMA bytes; NO K-direction padding
    # (full-dim blocks are exempt from the (8,128) rule).
    xs = [jnp.pad(x.astype(jnp.bfloat16), ((0, 0), (0, m_pad - m_true)))
          for x in parts]
    ws = [w.astype(jnp.bfloat16) for w in w_parts]
    b_cat = b_cat.astype(jnp.float32)
    noise_p = jnp.pad(noise.astype(jnp.float32),
                      ((0, 0), (0, m_pad - m_true)))

    kernel = _make_conv_reparam_kernel(len(xs), num_f, m_true, tile_m, m_pad,
                                       noise_std)

    k_total = sum(w.shape[1] for w in ws)
    cost = pl.CostEstimate(
        flops=2 * m_pad * k_total * two_f,
        transcendentals=3 * m_pad * num_f,           # 2x tanh + 1x exp
        bytes_accessed=(2 * (sum(x.size for x in xs)
                             + sum(w.size for w in ws))        # bf16
                        + 4 * (b_cat.size + noise_p.size
                               + num_f * m_pad + grid_m * tile_m)),  # f32
    )

    x_specs = [pl.BlockSpec((x.shape[0], tile_m), lambda i: (0, i))
               for x in xs]
    w_specs = [pl.BlockSpec(w.shape, lambda i: (0, 0)) for w in ws]
    b_spec = pl.BlockSpec(b_cat.shape, lambda i: (0, 0))
    noise_spec = pl.BlockSpec((num_f, tile_m), lambda i: (0, i))

    out, kl_parts = pl.pallas_call(
        kernel,
        out_shape=(jax.ShapeDtypeStruct((num_f, m_pad), jnp.float32),
                   jax.ShapeDtypeStruct((grid_m, 1, tile_m), jnp.float32)),
        grid_spec=pltpu.PrefetchScalarGridSpec(
            num_scalar_prefetch=0,
            grid=(grid_m,),
            in_specs=x_specs + w_specs + [b_spec, noise_spec],
            out_specs=[pl.BlockSpec((num_f, tile_m), lambda i: (0, i)),
                       pl.BlockSpec((1, 1, tile_m), lambda i: (i, 0, 0))],
        ),
        compiler_params=pltpu.CompilerParams(
            # Every output block is private to its grid step -> fully parallel
            # (lets v7x shard the grid across both TensorCores).
            dimension_semantics=("parallel",),
        ),
        cost_estimate=cost,
    )(*xs, *ws, b_cat, noise_p)

    kl = -0.5 * jnp.sum(kl_parts) / (m_true * num_f)
    return out[:, :m_true], kl


# ----------------------------------------------------------------------------
# Glue: channel-major im2col, parameter init, forward pass
# ----------------------------------------------------------------------------
def im2col_cm(x_cm, kh, kw, ph, pw):
    """[C, N, H, W] -> [C*kh*kw, N*H*W], K ordered (c, dh, dw) channel-major."""
    c, n, h, w = x_cm.shape
    xp = jnp.pad(x_cm, ((0, 0), (0, 0), (ph, ph), (pw, pw)))
    cols = []
    for dh in range(kh):
        for dw in range(kw):
            cols.append(xp[:, :, dh:dh + h, dw:dw + w])    # [C, N, H, W]
    pat = jnp.stack(cols, axis=1)                          # [C, kh*kw, N, H, W]
    return pat.reshape(c * kh * kw, n * h * w)


def init_conv_pair(key, out_c, in_c, kh, kw):
    """Fused (mu | sigma) conv params: W_cat [2F, K], b_cat [2F, 1]."""
    k1, k2, k3, k4 = jax.random.split(key, 4)
    fan_in = in_c * kh * kw
    bound = 1.0 / (fan_in ** 0.5)

    def one(kw_key, kb_key):
        w = jax.random.uniform(kw_key, (out_c, in_c, kh, kw), jnp.float32,
                               -bound, bound)
        b = jax.random.uniform(kb_key, (out_c,), jnp.float32, -bound, bound)
        return w.reshape(out_c, in_c * kh * kw), b

    w_mu, b_mu = one(k1, k2)
    w_sg, b_sg = one(k3, k4)
    w_cat = jnp.concatenate([w_mu, w_sg], axis=0)               # [2F, K]
    b_cat = jnp.concatenate([b_mu, b_sg], axis=0)[:, None]      # [2F, 1]
    return w_cat, b_cat


def init_params(key, num_channels, num_filters, kh, kw):
    keys = jax.random.split(key, 3)
    return dict(
        conv1=init_conv_pair(keys[0], num_filters, num_channels, kh, kw),
        conv2=init_conv_pair(keys[1], num_filters,
                             num_channels + num_filters, kh, kw),
        conv3=init_conv_pair(keys[2], num_filters, 2 * num_filters, 1, 1),
    )


def full_bayesian_dense_block(x_nchw, params, noise_key, *, num_filters,
                              kernel_h, kernel_w):
    """Forward pass. Returns (out [N, F, H, W], kl_loss scalar)."""
    n, c, h, w = x_nchw.shape
    f = num_filters
    assert kernel_h % 2 == 1 and kernel_w % 2 == 1, "odd kernels expected"
    ph, pw = (kernel_h - 1) // 2, (kernel_w - 1) // 2
    m = n * h * w

    # Unit-normal noise per layer (scaled by 0.1 inside the kernel), streamed
    # through the pipeline instead of generated on the EUP.
    k1, k2, k3 = jax.random.split(noise_key, 3)
    eps1 = jax.random.normal(k1, (f, m), jnp.float32)
    eps2 = jax.random.normal(k2, (f, m), jnp.float32)
    eps3 = jax.random.normal(k3, (f, m), jnp.float32)

    # Channel-major bf16 input so the im2col intermediates are half-size.
    x_cm = jnp.transpose(x_nchw, (1, 0, 2, 3)).astype(jnp.bfloat16)

    # --- conv1_mu/sigma + tanh + reparam + kl_1 ---
    p1 = im2col_cm(x_cm, kernel_h, kernel_w, ph, pw)            # [C*kh*kw, M]
    w1, b1 = params['conv1']
    o3_rows, kl_1 = fused_conv_reparam([p1], [w1], b1, eps1)

    # --- conv2 on o4 = cat(input, o3): reuse p1 for the x channels, only
    # im2col o3 (split-K matmul -> no HBM concat, no duplicated x patches) ---
    o3_cm = o3_rows.reshape(f, n, h, w).astype(jnp.bfloat16)
    p_o3 = im2col_cm(o3_cm, kernel_h, kernel_w, ph, pw)         # [F*kh*kw, M]
    w2, b2 = params['conv2']
    kx = c * kernel_h * kernel_w
    o7_rows, kl_2 = fused_conv_reparam([p1, p_o3],
                                       [w2[:, :kx], w2[:, kx:]],
                                       b2, eps2)

    # --- conv3 (1x1) on o8 = cat(o3, o7): single K=2F dot (tiny concat) ---
    w3, b3 = params['conv3']
    o8_rows = jnp.concatenate([o3_rows, o7_rows], axis=0)       # [2F, M]
    out_rows, kl_3 = fused_conv_reparam([o8_rows], [w3], b3, eps3)

    out_nchw = jnp.transpose(out_rows.reshape(f, n, h, w), (1, 0, 2, 3))
    kl_loss = 0.33 * (kl_1 + kl_2 + kl_3)   # 0.33 hard-coded as in the module
    # TODO(synk): Dropout2d is constructed in __init__ when drop_out > 0 but
    # never applied in the PyTorch forward(), so it is intentionally omitted.
    return out_nchw, kl_loss


if __name__ == "__main__":
    num_channels, num_filters = 4, 16
    kernel_h = kernel_w = 5
    N, H, W = 2, 16, 16

    key = jax.random.PRNGKey(0)
    k_x, k_w, k_n = jax.random.split(key, 3)

    x = jax.random.normal(k_x, (N, num_channels, H, W), jnp.float32)
    params = init_params(k_w, num_channels, num_filters, kernel_h, kernel_w)

    fwd = jax.jit(functools.partial(
        full_bayesian_dense_block, num_filters=num_filters,
        kernel_h=kernel_h, kernel_w=kernel_w))

    out, kl_loss = fwd(x, params, k_n)
    out = jax.block_until_ready(out)
    kl_loss = jax.block_until_ready(kl_loss)

    assert out.shape == (N, num_filters, H, W)
    assert kl_loss.shape == ()
    assert bool(jnp.isfinite(kl_loss))
    assert bool(jnp.all(jnp.isfinite(out)))
    print("KERNEL_OK")
</pallas_src>

<mosaic_0001>
module attributes {stable_mosaic.version = 11 : i64} {
  func.func @kernel(%arg0: i32, %arg1: memref<100x512xbf16, #tpu.memory_space<vmem>>, %arg2: memref<32x100xbf16, #tpu.memory_space<vmem>>, %arg3: memref<32x1xf32, #tpu.memory_space<vmem>>, %arg4: memref<16x512xf32, #tpu.memory_space<vmem>>, %arg5: memref<16x512xf32, #tpu.memory_space<vmem>>, %arg6: memref<1x1x512xf32, #tpu.memory_space<vmem>>) attributes {dimension_semantics = [#tpu.dimension_semantics<parallel>], iteration_bounds = array<i64: 1>, scalar_prefetch = 0 : i64, scratch_operands = 0 : i64, tpu.core_type = #tpu.core_type<tc>, window_params = [{transform_indices = @transform_0, window_bounds = array<i64: 100, 512>}, {pipeline_mode = #tpu.pipeline_mode<synchronous>, transform_indices = @transform_1, window_bounds = array<i64: 32, 100>}, {pipeline_mode = #tpu.pipeline_mode<synchronous>, transform_indices = @transform_2, window_bounds = array<i64: 32, 1>}, {transform_indices = @transform_3, window_bounds = array<i64: 16, 512>}, {transform_indices = @transform_4, window_bounds = array<i64: 16, 512>}, {transform_indices = @transform_5, window_bounds = array<i64: 1, 1, 512>}]} {
    %c0 = arith.constant 0 : index
    %c0_0 = arith.constant 0 : index
    %0 = vector.load %arg2[%c0, %c0_0] : memref<32x100xbf16, #tpu.memory_space<vmem>>, vector<32x100xbf16>
    %c0_1 = arith.constant 0 : index
    %c0_2 = arith.constant 0 : index
    %1 = vector.load %arg1[%c0_1, %c0_2] : memref<100x512xbf16, #tpu.memory_space<vmem>>, vector<100x512xbf16>
    %cst = arith.constant dense<0.000000e+00> : vector<32x512xf32>
    %2 = tpu.matmul %0, %1, %cst {dimension_numbers = #tpu.dot_dimension_numbers<[1], [0], [0], [1], [0, 0, 1, 1], [], []>} : vector<32x100xbf16>, vector<100x512xbf16>, vector<32x512xf32> -> vector<32x512xf32>
    %c0_3 = arith.constant 0 : index
    %c0_4 = arith.constant 0 : index
    %3 = vector.load %arg3[%c0_3, %c0_4] : memref<32x1xf32, #tpu.memory_space<vmem>>, vector<32x1xf32>
    %4 = vector.broadcast %3 : vector<32x1xf32> to vector<32x512xf32>
    %5 = arith.addf %2, %4 : vector<32x512xf32>
    %6 = vector.extract_strided_slice %5 {offsets = [0, 0], sizes = [16, 512], strides = [1, 1]} : vector<32x512xf32> to vector<16x512xf32>
    %7 = math.tanh %6 : vector<16x512xf32>
    %8 = vector.extract_strided_slice %5 {offsets = [16, 0], sizes = [16, 512], strides = [1, 1]} : vector<32x512xf32> to vector<16x512xf32>
    %9 = math.tanh %8 : vector<16x512xf32>
    %cst_5 = arith.constant 5.000000e-01 : f32
    %10 = vector.broadcast %cst_5 : f32 to vector<16x512xf32>
    %11 = arith.mulf %10, %9 : vector<16x512xf32>
    %12 = math.exp %11 : vector<16x512xf32>
    %c0_6 = arith.constant 0 : index
    %c0_7 = arith.constant 0 : index
    %13 = vector.load %arg4[%c0_6, %c0_7] : memref<16x512xf32, #tpu.memory_space<vmem>>, vector<16x512xf32>
    %cst_8 = arith.constant 1.000000e-01 : f32
    %14 = vector.broadcast %cst_8 : f32 to vector<16x512xf32>
    %15 = arith.mulf %14, %13 : vector<16x512xf32>
    %16 = arith.mulf %12, %15 : vector<16x512xf32>
    %17 = arith.addf %7, %16 : vector<16x512xf32>
    %c0_9 = arith.constant 0 : index
    %c0_10 = arith.constant 0 : index
    %18 = vector.load %arg5[%c0_9, %c0_10] : memref<16x512xf32, #tpu.memory_space<vmem>>, vector<16x512xf32>
    tpu.vector_store %arg5[%c0_9, %c0_10], %17 {strides = array<i32>} : memref<16x512xf32, #tpu.memory_space<vmem>>, vector<16x512xf32>,
    %cst_11 = arith.constant 1.000000e+00 : f32
    %19 = vector.broadcast %cst_11 : f32 to vector<16x512xf32>
    %20 = arith.addf %19, %9 : vector<16x512xf32>
    %21 = arith.mulf %7, %7 : vector<16x512xf32>
    %22 = arith.subf %20, %21 : vector<16x512xf32>
    %23 = arith.mulf %12, %12 : vector<16x512xf32>
    %24 = arith.subf %22, %23 : vector<16x512xf32>
    %cst_12 = arith.constant dense<0.000000e+00> : vector<512xf32>
    %25 = vector.multi_reduction <add>, %24, %cst_12 [0] : vector<16x512xf32> to vector<512xf32>
    %26 = vector.shape_cast %25 : vector<512xf32> to vector<1x512xf32>
    %27 = vector.shape_cast %26 : vector<1x512xf32> to vector<1x1x512xf32>
    %c0_13 = arith.constant 0 : index
    %c0_14 = arith.constant 0 : index
    %c0_15 = arith.constant 0 : index
    %28 = vector.load %arg6[%c0_13, %c0_14, %c0_15] : memref<1x1x512xf32, #tpu.memory_space<vmem>>, vector<1x1x512xf32>
    tpu.vector_store %arg6[%c0_13, %c0_14, %c0_15], %27 {strides = array<i32>} : memref<1x1x512xf32, #tpu.memory_space<vmem>>, vector<1x1x512xf32>,
    return
  }
  func.func @transform_0(%arg0: i32) -> (i32, i32) {
    %c0_i32 = arith.constant 0 : i32
    %c0_i32_0 = arith.constant 0 : i32
    return %c0_i32, %arg0 : i32, i32
  }
  func.func @transform_1(%arg0: i32) -> (i32, i32) {
    %c0_i32 = arith.constant 0 : i32
    %c0_i32_0 = arith.constant 0 : i32
    %c0_i32_1 = arith.constant 0 : i32
    return %c0_i32, %c0_i32_0 : i32, i32
  }
  func.func @transform_2(%arg0: i32) -> (i32, i32) {
    %c0_i32 = arith.constant 0 : i32
    %c0_i32_0 = arith.constant 0 : i32
    %c0_i32_1 = arith.constant 0 : i32
    return %c0_i32, %c0_i32_0 : i32, i32
  }
  func.func @transform_3(%arg0: i32) -> (i32, i32) {
    %c0_i32 = arith.constant 0 : i32
    %c0_i32_0 = arith.constant 0 : i32
    return %c0_i32, %arg0 : i32, i32
  }
  func.func @transform_4(%arg0: i32) -> (i32, i32) {
    %c0_i32 = arith.constant 0 : i32
    %c0_i32_0 = arith.constant 0 : i32
    return %c0_i32, %arg0 : i32, i32
  }
  func.func @transform_5(%arg0: i32) -> (i32, i32, i32) {
    %c0_i32 = arith.constant 0 : i32
    %c0_i32_0 = arith.constant 0 : i32
    %c0_i32_1 = arith.constant 0 : i32
    return %arg0, %c0_i32, %c0_i32_0 : i32, i32, i32
  }
}

module attributes {stable_mosaic.version = 11 : i64} {
  func.func @kernel(%arg0: i32, %arg1: memref<100x512xbf16, #tpu.memory_space<vmem>>, %arg2: memref<400x512xbf16, #tpu.memory_space<vmem>>, %arg3: memref<32x100xbf16, #tpu.memory_space<vmem>>, %arg4: memref<32x400xbf16, #tpu.memory_space<vmem>>, %arg5: memref<32x1xf32, #tpu.memory_space<vmem>>, %arg6: memref<16x512xf32, #tpu.memory_space<vmem>>, %arg7: memref<16x512xf32, #tpu.memory_space<vmem>>, %arg8: memref<1x1x512xf32, #tpu.memory_space<vmem>>) attributes {dimension_semantics = [#tpu.dimension_semantics<parallel>], iteration_bounds = array<i64: 1>, scalar_prefetch = 0 : i64, scratch_operands = 0 : i64, tpu.core_type = #tpu.core_type<tc>, window_params = [{transform_indices = @transform_0, window_bounds = array<i64: 100, 512>}, {transform_indices = @transform_1, window_bounds = array<i64: 400, 512>}, {pipeline_mode = #tpu.pipeline_mode<synchronous>, transform_indices = @transform_2, window_bounds = array<i64: 32, 100>}, {pipeline_mode = #tpu.pipeline_mode<synchronous>, transform_indices = @transform_3, window_bounds = array<i64: 32, 400>}, {pipeline_mode = #tpu.pipeline_mode<synchronous>, transform_indices = @transform_4, window_bounds = array<i64: 32, 1>}, {transform_indices = @transform_5, window_bounds = array<i64: 16, 512>}, {transform_indices = @transform_6, window_bounds = array<i64: 16, 512>}, {transform_indices = @transform_7, window_bounds = array<i64: 1, 1, 512>}]} {
    %c0 = arith.constant 0 : index
    %c0_0 = arith.constant 0 : index
    %0 = vector.load %arg3[%c0, %c0_0] : memref<32x100xbf16, #tpu.memory_space<vmem>>, vector<32x100xbf16>
    %c0_1 = arith.constant 0 : index
    %c0_2 = arith.constant 0 : index
    %1 = vector.load %arg1[%c0_1, %c0_2] : memref<100x512xbf16, #tpu.memory_space<vmem>>, vector<100x512xbf16>
    %cst = arith.constant dense<0.000000e+00> : vector<32x512xf32>
    %2 = tpu.matmul %0, %1, %cst {dimension_numbers = #tpu.dot_dimension_numbers<[1], [0], [0], [1], [0, 0, 1, 1], [], []>} : vector<32x100xbf16>, vector<100x512xbf16>, vector<32x512xf32> -> vector<32x512xf32>
    %c0_3 = arith.constant 0 : index
    %c0_4 = arith.constant 0 : index
    %3 = vector.load %arg4[%c0_3, %c0_4] : memref<32x400xbf16, #tpu.memory_space<vmem>>, vector<32x400xbf16>
    %c0_5 = arith.constant 0 : index
    %c0_6 = arith.constant 0 : index
    %4 = vector.load %arg2[%c0_5, %c0_6] : memref<400x512xbf16, #tpu.memory_space<vmem>>, vector<400x512xbf16>
    %cst_7 = arith.constant dense<0.000000e+00> : vector<32x512xf32>
    %5 = tpu.matmul %3, %4, %cst_7 {dimension_numbers = #tpu.dot_dimension_numbers<[1], [0], [0], [1], [0, 0, 1, 1], [], []>} : vector<32x400xbf16>, vector<400x512xbf16>, vector<32x512xf32> -> vector<32x512xf32>
    %6 = arith.addf %2, %5 : vector<32x512xf32>
    %c0_8 = arith.constant 0 : index
    %c0_9 = arith.constant 0 : index
    %7 = vector.load %arg5[%c0_8, %c0_9] : memref<32x1xf32, #tpu.memory_space<vmem>>, vector<32x1xf32>
    %8 = vector.broadcast %7 : vector<32x1xf32> to vector<32x512xf32>
    %9 = arith.addf %6, %8 : vector<32x512xf32>
    %10 = vector.extract_strided_slice %9 {offsets = [0, 0], sizes = [16, 512], strides = [1, 1]} : vector<32x512xf32> to vector<16x512xf32>
    %11 = math.tanh %10 : vector<16x512xf32>
    %12 = vector.extract_strided_slice %9 {offsets = [16, 0], sizes = [16, 512], strides = [1, 1]} : vector<32x512xf32> to vector<16x512xf32>
    %13 = math.tanh %12 : vector<16x512xf32>
    %cst_10 = arith.constant 5.000000e-01 : f32
    %14 = vector.broadcast %cst_10 : f32 to vector<16x512xf32>
    %15 = arith.mulf %14, %13 : vector<16x512xf32>
    %16 = math.exp %15 : vector<16x512xf32>
    %c0_11 = arith.constant 0 : index
    %c0_12 = arith.constant 0 : index
    %17 = vector.load %arg6[%c0_11, %c0_12] : memref<16x512xf32, #tpu.memory_space<vmem>>, vector<16x512xf32>
    %cst_13 = arith.constant 1.000000e-01 : f32
    %18 = vector.broadcast %cst_13 : f32 to vector<16x512xf32>
    %19 = arith.mulf %18, %17 : vector<16x512xf32>
    %20 = arith.mulf %16, %19 : vector<16x512xf32>
    %21 = arith.addf %11, %20 : vector<16x512xf32>
    %c0_14 = arith.constant 0 : index
    %c0_15 = arith.constant 0 : index
    %22 = vector.load %arg7[%c0_14, %c0_15] : memref<16x512xf32, #tpu.memory_space<vmem>>, vector<16x512xf32>
    tpu.vector_store %arg7[%c0_14, %c0_15], %21 {strides = array<i32>} : memref<16x512xf32, #tpu.memory_space<vmem>>, vector<16x512xf32>,
    %cst_16 = arith.constant 1.000000e+00 : f32
    %23 = vector.broadcast %cst_16 : f32 to vector<16x512xf32>
    %24 = arith.addf %23, %13 : vector<16x512xf32>
    %25 = arith.mulf %11, %11 : vector<16x512xf32>
    %26 = arith.subf %24, %25 : vector<16x512xf32>
    %27 = arith.mulf %16, %16 : vector<16x512xf32>
    %28 = arith.subf %26, %27 : vector<16x512xf32>
    %cst_17 = arith.constant dense<0.000000e+00> : vector<512xf32>
    %29 = vector.multi_reduction <add>, %28, %cst_17 [0] : vector<16x512xf32> to vector<512xf32>
    %30 = vector.shape_cast %29 : vector<512xf32> to vector<1x512xf32>
    %31 = vector.shape_cast %30 : vector<1x512xf32> to vector<1x1x512xf32>
    %c0_18 = arith.constant 0 : index
    %c0_19 = arith.constant 0 : index
    %c0_20 = arith.constant 0 : index
    %32 = vector.load %arg8[%c0_18, %c0_19, %c0_20] : memref<1x1x512xf32, #tpu.memory_space<vmem>>, vector<1x1x512xf32>
    tpu.vector_store %arg8[%c0_18, %c0_19, %c0_20], %31 {strides = array<i32>} : memref<1x1x512xf32, #tpu.memory_space<vmem>>, vector<1x1x512xf32>,
    return
  }
  func.func @transform_0(%arg0: i32) -> (i32, i32) {
    %c0_i32 = arith.constant 0 : i32
    %c0_i32_0 = arith.constant 0 : i32
    return %c0_i32, %arg0 : i32, i32
  }
  func.func @transform_1(%arg0: i32) -> (i32, i32) {
    %c0_i32 = arith.constant 0 : i32
    %c0_i32_0 = arith.constant 0 : i32
    return %c0_i32, %arg0 : i32, i32
  }
  func.func @transform_2(%arg0: i32) -> (i32, i32) {
    %c0_i32 = arith.constant 0 : i32
    %c0_i32_0 = arith.constant 0 : i32
    %c0_i32_1 = arith.constant 0 : i32
    return %c0_i32, %c0_i32_0 : i32, i32
  }
  func.func @transform_3(%arg0: i32) -> (i32, i32) {
    %c0_i32 = arith.constant 0 : i32
    %c0_i32_0 = arith.constant 0 : i32
    %c0_i32_1 = arith.constant 0 : i32
    return %c0_i32, %c0_i32_0 : i32, i32
  }
  func.func @transform_4(%arg0: i32) -> (i32, i32) {
    %c0_i32 = arith.constant 0 : i32
    %c0_i32_0 = arith.constant 0 : i32
    %c0_i32_1 = arith.constant 0 : i32
    return %c0_i32, %c0_i32_0 : i32, i32
  }
  func.func @transform_5(%arg0: i32) -> (i32, i32) {
    %c0_i32 = arith.constant 0 : i32
    %c0_i32_0 = arith.constant 0 : i32
    return %c0_i32, %arg0 : i32, i32
  }
  func.func @transform_6(%arg0: i32) -> (i32, i32) {
    %c0_i32 = arith.constant 0 : i32
    %c0_i32_0 = arith.constant 0 : i32
    return %c0_i32, %arg0 : i32, i32
  }
  func.func @transform_7(%arg0: i32) -> (i32, i32, i32) {
    %c0_i32 = arith.constant 0 : i32
    %c0_i32_0 = arith.constant 0 : i32
    %c0_i32_1 = arith.constant 0 : i32
    return %arg0, %c0_i32, %c0_i32_0 : i32, i32, i32
  }
}

module attributes {stable_mosaic.version = 11 : i64} {
  func.func @kernel(%arg0: i32, %arg1: memref<32x512xbf16, #tpu.memory_space<vmem>>, %arg2: memref<32x32xbf16, #tpu.memory_space<vmem>>, %arg3: memref<32x1xf32, #tpu.memory_space<vmem>>, %arg4: memref<16x512xf32, #tpu.memory_space<vmem>>, %arg5: memref<16x512xf32, #tpu.memory_space<vmem>>, %arg6: memref<1x1x512xf32, #tpu.memory_space<vmem>>) attributes {dimension_semantics = [#tpu.dimension_semantics<parallel>], iteration_bounds = array<i64: 1>, scalar_prefetch = 0 : i64, scratch_operands = 0 : i64, tpu.core_type = #tpu.core_type<tc>, window_params = [{transform_indices = @transform_0, window_bounds = array<i64: 32, 512>}, {pipeline_mode = #tpu.pipeline_mode<synchronous>, transform_indices = @transform_1, window_bounds = array<i64: 32, 32>}, {pipeline_mode = #tpu.pipeline_mode<synchronous>, transform_indices = @transform_2, window_bounds = array<i64: 32, 1>}, {transform_indices = @transform_3, window_bounds = array<i64: 16, 512>}, {transform_indices = @transform_4, window_bounds = array<i64: 16, 512>}, {transform_indices = @transform_5, window_bounds = array<i64: 1, 1, 512>}]} {
    %c0 = arith.constant 0 : index
    %c0_0 = arith.constant 0 : index
    %0 = vector.load %arg2[%c0, %c0_0] : memref<32x32xbf16, #tpu.memory_space<vmem>>, vector<32x32xbf16>
    %c0_1 = arith.constant 0 : index
    %c0_2 = arith.constant 0 : index
    %1 = vector.load %arg1[%c0_1, %c0_2] : memref<32x512xbf16, #tpu.memory_space<vmem>>, vector<32x512xbf16>
    %cst = arith.constant dense<0.000000e+00> : vector<32x512xf32>
    %2 = tpu.matmul %0, %1, %cst {dimension_numbers = #tpu.dot_dimension_numbers<[1], [0], [0], [1], [0, 0, 1, 1], [], []>} : vector<32x32xbf16>, vector<32x512xbf16>, vector<32x512xf32> -> vector<32x512xf32>
    %c0_3 = arith.constant 0 : index
    %c0_4 = arith.constant 0 : index
    %3 = vector.load %arg3[%c0_3, %c0_4] : memref<32x1xf32, #tpu.memory_space<vmem>>, vector<32x1xf32>
    %4 = vector.broadcast %3 : vector<32x1xf32> to vector<32x512xf32>
    %5 = arith.addf %2, %4 : vector<32x512xf32>
    %6 = vector.extract_strided_slice %5 {offsets = [0, 0], sizes = [16, 512], strides = [1, 1]} : vector<32x512xf32> to vector<16x512xf32>
    %7 = math.tanh %6 : vector<16x512xf32>
    %8 = vector.extract_strided_slice %5 {offsets = [16, 0], sizes = [16, 512], strides = [1, 1]} : vector<32x512xf32> to vector<16x512xf32>
    %9 = math.tanh %8 : vector<16x512xf32>
    %cst_5 = arith.constant 5.000000e-01 : f32
    %10 = vector.broadcast %cst_5 : f32 to vector<16x512xf32>
    %11 = arith.mulf %10, %9 : vector<16x512xf32>
    %12 = math.exp %11 : vector<16x512xf32>
    %c0_6 = arith.constant 0 : index
    %c0_7 = arith.constant 0 : index
    %13 = vector.load %arg4[%c0_6, %c0_7] : memref<16x512xf32, #tpu.memory_space<vmem>>, vector<16x512xf32>
    %cst_8 = arith.constant 1.000000e-01 : f32
    %14 = vector.broadcast %cst_8 : f32 to vector<16x512xf32>
    %15 = arith.mulf %14, %13 : vector<16x512xf32>
    %16 = arith.mulf %12, %15 : vector<16x512xf32>
    %17 = arith.addf %7, %16 : vector<16x512xf32>
    %c0_9 = arith.constant 0 : index
    %c0_10 = arith.constant 0 : index
    %18 = vector.load %arg5[%c0_9, %c0_10] : memref<16x512xf32, #tpu.memory_space<vmem>>, vector<16x512xf32>
    tpu.vector_store %arg5[%c0_9, %c0_10], %17 {strides = array<i32>} : memref<16x512xf32, #tpu.memory_space<vmem>>, vector<16x512xf32>,
    %cst_11 = arith.constant 1.000000e+00 : f32
    %19 = vector.broadcast %cst_11 : f32 to vector<16x512xf32>
    %20 = arith.addf %19, %9 : vector<16x512xf32>
    %21 = arith.mulf %7, %7 : vector<16x512xf32>
    %22 = arith.subf %20, %21 : vector<16x512xf32>
    %23 = arith.mulf %12, %12 : vector<16x512xf32>
    %24 = arith.subf %22, %23 : vector<16x512xf32>
    %cst_12 = arith.constant dense<0.000000e+00> : vector<512xf32>
    %25 = vector.multi_reduction <add>, %24, %cst_12 [0] : vector<16x512xf32> to vector<512xf32>
    %26 = vector.shape_cast %25 : vector<512xf32> to vector<1x512xf32>
    %27 = vector.shape_cast %26 : vector<1x512xf32> to vector<1x1x512xf32>
    %c0_13 = arith.constant 0 : index
    %c0_14 = arith.constant 0 : index
    %c0_15 = arith.constant 0 : index
    %28 = vector.load %arg6[%c0_13, %c0_14, %c0_15] : memref<1x1x512xf32, #tpu.memory_space<vmem>>, vector<1x1x512xf32>
    tpu.vector_store %arg6[%c0_13, %c0_14, %c0_15], %27 {strides = array<i32>} : memref<1x1x512xf32, #tpu.memory_space<vmem>>, vector<1x1x512xf32>,
    return
  }
  func.func @transform_0(%arg0: i32) -> (i32, i32) {
    %c0_i32 = arith.constant 0 : i32
    %c0_i32_0 = arith.constant 0 : i32
    return %c0_i32, %arg0 : i32, i32
  }
  func.func @transform_1(%arg0: i32) -> (i32, i32) {
    %c0_i32 = arith.constant 0 : i32
    %c0_i32_0 = arith.constant 0 : i32
    %c0_i32_1 = arith.constant 0 : i32
    return %c0_i32, %c0_i32_0 : i32, i32
  }
  func.func @transform_2(%arg0: i32) -> (i32, i32) {
    %c0_i32 = arith.constant 0 : i32
    %c0_i32_0 = arith.constant 0 : i32
    %c0_i32_1 = arith.constant 0 : i32
    return %c0_i32, %c0_i32_0 : i32, i32
  }
  func.func @transform_3(%arg0: i32) -> (i32, i32) {
    %c0_i32 = arith.constant 0 : i32
    %c0_i32_0 = arith.constant 0 : i32
    return %c0_i32, %arg0 : i32, i32
  }
  func.func @transform_4(%arg0: i32) -> (i32, i32) {
    %c0_i32 = arith.constant 0 : i32
    %c0_i32_0 = arith.constant 0 : i32
    return %c0_i32, %arg0 : i32, i32
  }
  func.func @transform_5(%arg0: i32) -> (i32, i32, i32) {
    %c0_i32 = arith.constant 0 : i32
    %c0_i32_0 = arith.constant 0 : i32
    %c0_i32_1 = arith.constant 0 : i32
    return %arg0, %c0_i32, %c0_i32_0 : i32, i32, i32
  }
}

</mosaic_0001>

<llo_original>
// kernel: full_bayesian_dense_block.5
$region0: #{full_bayesian_dense_block.5}
  #allocation0 [shape = 'u32[]', space=smem, size = 0x4, offset = 0x4, fixed_abs, tag = 'smem constant byte address 0x4 - core index']
  #allocation1 [shape = 'u32[144,128]{1,0:T(1,128)}', space=vmem, size = 0x12000, scoped, tag = 'internal scratch']
  %s0 = inlined_call_operand.vmem [shape: bf16[100,512], index: 0, kind: input, shape index: {}]
  %s1 = inlined_call_operand.vmem [shape: bf16[32,100], index: 1, kind: input, shape index: {}]
  %s2 = inlined_call_operand.vmem [shape: f32[32,1], index: 2, kind: input, shape index: {}]
  %s3 = inlined_call_operand.vmem [shape: f32[16,512], index: 3, kind: input, shape index: {}]
  %s4 = inlined_call_operand.vmem [shape: f32[16,512], index: 4, kind: output, shape index: {0}]
  %s5 = inlined_call_operand.vmem [shape: f32[1,1,512], index: 5, kind: output, shape index: {1}]
  %6 = xla_tuple %s4, %s5
  %s7 = sld [smem:[#allocation0]]
  $region34: #{full_bayesian_dense_block.5} parent=0
    _
  %s9 = ssub.s32 1, %s7
  %s10 = scalar_select 0, %s9, %s7
  // Predicated region
  $region2: #{full_bayesian_dense_block.5} parent=0 // pred_check
    _
  $region3: #{full_bayesian_dense_block.5} parent=0 // pred_check_branch
    %12 = sbr.rel (0) target = $region5
  $region4: #{full_bayesian_dense_block.5} parent=0 // pred_region
    _
  $region5: #{full_bayesian_dense_block.5} parent=0 // pred_fallthru
    _
  // Predicated region
  $region6: #{full_bayesian_dense_block.5} parent=0 // pred_check
    _
  $region7: #{full_bayesian_dense_block.5} parent=0 // pred_check_branch
    %14 = sbr.rel (0) target = $region9
  $region8: #{full_bayesian_dense_block.5} parent=0 // pred_region
    _
  $region9: #{full_bayesian_dense_block.5} parent=0 // pred_fallthru
    _
  // Predicated region
  $region10: #{full_bayesian_dense_block.5} parent=0 // pred_check
    _
  $region11: #{full_bayesian_dense_block.5} parent=0 // pred_check_branch
    %16 = sbr.rel (0) target = $region13
  $region12: #{full_bayesian_dense_block.5} parent=0 // pred_region
    _
  $region13: #{full_bayesian_dense_block.5} parent=0 // pred_fallthru
    _
  // Predicated region
  $region14: #{full_bayesian_dense_block.5} parent=0 // pred_check
    _
  $region15: #{full_bayesian_dense_block.5} parent=0 // pred_check_branch
    %18 = sbr.rel (0) target = $region17
  $region16: #{full_bayesian_dense_block.5} parent=0 // pred_region
    _
  $region17: #{full_bayesian_dense_block.5} parent=0 // pred_fallthru
    _
  %v20 = vld [vmem:[%s1] sm:$0xf]
  %v21 = vld [vmem:[%s1 + $0x4] sm:$0xf]
  %v22 = vld [vmem:[%s1 + $0x8] sm:$0xf]
  %v23 = vld [vmem:[%s1 + $0xc] sm:$0xf]
  %v24 = vld [vmem:[%s0] sm:$0xff]
  %v25 = vld [vmem:[%s0 + $0x8] sm:$0xff]
  %v26 = vld [vmem:[%s0 + $0x10] sm:$0xff]
  %v27 = vld [vmem:[%s0 + $0x18] sm:$0xff]
  %v28 = vld [vmem:[%s0 + $0x20] sm:$0xff]
  %v29 = vld [vmem:[%s0 + $0x28] sm:$0xff]
  %v30 = vld [vmem:[%s0 + $0x30] sm:$0xff]
  %v31 = vld [vmem:[%s0 + $0x38] sm:$0xff]
  %v32 = vld [vmem:[%s0 + $0x40] sm:$0xff]
  %v33 = vld [vmem:[%s0 + $0x48] sm:$0xff]
  %v34 = vld [vmem:[%s0 + $0x50] sm:$0xff]
  %v35 = vld [vmem:[%s0 + $0x58] sm:$0xff]
  %v36 = vld [vmem:[%s0 + $0x60] sm:$0xff]
  %v37 = vld [vmem:[%s0 + $0x68] sm:$0xff]
  %v38 = vld [vmem:[%s0 + $0x70] sm:$0xff]
  %v39 = vld [vmem:[%s0 + $0x78] sm:$0xff]
  %v40 = vld [vmem:[%s0 + $0x80] sm:$0xff]
  %v41 = vld [vmem:[%s0 + $0x88] sm:$0xff]
  %v42 = vld [vmem:[%s0 + $0x90] sm:$0xff]
  %v43 = vld [vmem:[%s0 + $0x98] sm:$0xff]
  %v44 = vld [vmem:[%s0 + $0xa0] sm:$0xff]
  %v45 = vld [vmem:[%s0 + $0xa8] sm:$0xff]
  %v46 = vld [vmem:[%s0 + $0xb0] sm:$0xff]
  %v47 = vld [vmem:[%s0 + $0xb8] sm:$0xff]
  %v48 = vld [vmem:[%s0 + $0xc0] sm:$0x33]
  %v49 = vld [vmem:[%s0 + $0xc8] sm:$0x33]
  %v50 = vld [vmem:[%s2] sm:$0xff]
  %v51 = vld [vmem:[%s2 + $0x8] sm:$0xff]
  %v52 = vld [vmem:[%s2 + $0x10] sm:$0xff]
  %v53 = vld [vmem:[%s2 + $0x18] sm:$0xff]
  %55 = vset.pattern.permute.xlu0 0
  %56 = vperm.xlu0 %55, %v50
  %v57 = vpop.permute.xlu0 %56
  %60 = vset.pattern.permute.xlu0 0
  %61 = vperm.xlu0 %60, %v51
  %v62 = vpop.permute.xlu0 %61
  %65 = vset.pattern.permute.xlu0 0
  %66 = vperm.xlu0 %65, %v52
  %v67 = vpop.permute.xlu0 %66
  %70 = vset.pattern.permute.xlu0 0
  %71 = vperm.xlu0 %70, %v53
  %v72 = vpop.permute.xlu0 %71
  %v78 = vunpack.c.l.b16 %v20
  %v79 = vunpack.c.l.b16 %v21
  %v80 = vunpack.c.l.b16 %v22
  %v81 = vunpack.c.l.b16 %v23
  %v82 = vpack.c.b16 %v79, %v78
  %v83 = vpack.c.b16 %v81, %v80
  %v110 = vunpack.c.l.b16 %v24
  %v111 = vunpack.c.h.b16 %v24
  %v112 = vunpack.c.l.b16 %v25
  %v113 = vunpack.c.h.b16 %v25
  %v114 = vunpack.c.l.b16 %v26
  %v115 = vunpack.c.h.b16 %v26
  %v116 = vunpack.c.l.b16 %v27
  %v117 = vunpack.c.h.b16 %v27
  %v118 = vunpack.c.l.b16 %v28
  %v119 = vunpack.c.h.b16 %v28
  %v120 = vunpack.c.l.b16 %v29
  %v121 = vunpack.c.h.b16 %v29
  %v122 = vunpack.c.l.b16 %v30
  %v123 = vunpack.c.h.b16 %v30
  %v124 = vunpack.c.l.b16 %v31
  %v125 = vunpack.c.h.b16 %v31
  %v126 = vunpack.c.l.b16 %v32
  %v127 = vunpack.c.h.b16 %v32
  %v128 = vunpack.c.l.b16 %v33
  %v129 = vunpack.c.h.b16 %v33
  %v130 = vunpack.c.l.b16 %v34
  %v131 = vunpack.c.h.b16 %v34
  %v132 = vunpack.c.l.b16 %v35
  %v133 = vunpack.c.h.b16 %v35
  %v134 = vunpack.c.l.b16 %v36
  %v135 = vunpack.c.h.b16 %v36
  %v136 = vunpack.c.l.b16 %v37
  %v137 = vunpack.c.h.b16 %v37
  %v138 = vunpack.c.l.b16 %v38
  %v139 = vunpack.c.h.b16 %v38
  %v140 = vunpack.c.l.b16 %v39
  %v141 = vunpack.c.h.b16 %v39
  %v142 = vunpack.c.l.b16 %v40
  %v143 = vunpack.c.h.b16 %v40
  %v144 = vunpack.c.l.b16 %v41
  %v145 = vunpack.c.h.b16 %v41
  %v146 = vunpack.c.l.b16 %v42
  %v147 = vunpack.c.h.b16 %v42
  %v148 = vunpack.c.l.b16 %v43
  %v149 = vunpack.c.h.b16 %v43
  %v150 = vunpack.c.l.b16 %v44
  %v151 = vunpack.c.h.b16 %v44
  %v152 = vunpack.c.l.b16 %v45
  %v153 = vunpack.c.h.b16 %v45
  %v154 = vunpack.c.l.b16 %v46
  %v155 = vunpack.c.h.b16 %v46
  %v156 = vunpack.c.l.b16 %v47
  %v157 = vunpack.c.h.b16 %v47
  %v158 = vunpack.c.l.b16 %v48
  %v159 = vunpack.c.h.b16 %v48
  %v160 = vunpack.c.l.b16 %v49
  %v161 = vunpack.c.h.b16 %v49
  %v162 = vpack.c.b16 %v114, %v110
  %v163 = vpack.c.b16 %v115, %v111
  %v164 = vpack.c.b16 %v116, %v112
  %v165 = vpack.c.b16 %v117, %v113
  %v166 = vpack.c.b16 %v122, %v118
  %v167 = vpack.c.b16 %v123, %v119
  %v168 = vpack.c.b16 %v124, %v120
  %v169 = vpack.c.b16 %v125, %v121
  %v170 = vpack.c.b16 %v130, %v126
  %v171 = vpack.c.b16 %v131, %v127
  %v172 = vpack.c.b16 %v132, %v128
  %v173 = vpack.c.b16 %v133, %v129
  %v174 = vpack.c.b16 %v138, %v134
  %v175 = vpack.c.b16 %v139, %v135
  %v176 = vpack.c.b16 %v140, %v136
  %v177 = vpack.c.b16 %v141, %v137
  %v178 = vpack.c.b16 %v146, %v142
  %v179 = vpack.c.b16 %v147, %v143
  %v180 = vpack.c.b16 %v148, %v144
  %v181 = vpack.c.b16 %v149, %v145
  %v182 = vpack.c.b16 %v154, %v150
  %v183 = vpack.c.b16 %v155, %v151
  %v184 = vpack.c.b16 %v156, %v152
  %v185 = vpack.c.b16 %v157, %v153
  %v186 = vpack.c.b16 %v158, %v158
  %v187 = vpack.c.b16 %v159, %v159
  %v188 = vpack.c.b16 %v160, %v160
  %v189 = vpack.c.b16 %v161, %v161
  %vm214 = vcmask 818176
  %v216 = vsel %vm214, %v82, 0
  %v219 = vsel %vm214, %v83, 0
  %vm221 = vcmask 1041408
  %v223 = vsel %vm221, %v186, 0
  %v226 = vsel %vm221, %v187, 0
  %v229 = vsel %vm221, %v188, 0
  %v232 = vsel %vm221, %v189, 0
  %234 = vmatprep.subr.bf16.mxu0 %v163
  %235 = vmatpush1.bf16.msra.mxu0 %v162
  %236 = vmatprep.subr.bf16.mxu0 %v167
  %237 = vmatpush1.bf16.msra.mxu0 %v166
  %238 = vmatprep.subr.bf16.mxu0 %v171
  %239 = vmatpush1.bf16.msra.mxu0 %v170
  %240 = vmatprep.subr.bf16.mxu0 %v175
  %241 = vmatpush1.bf16.msra.mxu0 %v174
  %242 = vmatprep.subr.bf16.mxu0 %v179
  %243 = vmatpush1.bf16.msra.mxu0 %v178
  %244 = vmatprep.subr.bf16.mxu0 %v183
  %245 = vmatpush1.bf16.msra.mxu0 %v182
  %246 = vmatprep.subr.bf16.mxu0 %v226
  %247 = vmatpush1.bf16.msra.mxu0 %v223
  %248 = vmatprep.subr.bf16.mxu0 0
  %249 = vmatpush1.bf16.msra.mxu0 0
  %250 = vmatprep.subr.bf16.mxu0 0
  %251 = vmatpush1.bf16.msra.mxu0 0
  %252 = vmatprep.subr.bf16.mxu0 0
  %253 = vmatpush1.bf16.msra.mxu0 0
  %254 = vmatprep.subr.bf16.mxu0 0
  %255 = vmatpush1.bf16.msra.mxu0 0
  %256 = vmatprep.subr.bf16.mxu0 0
  %257 = vmatpush1.bf16.msra.mxu0 0
  %258 = vmatprep.subr.bf16.mxu0 0
  %259 = vmatpush1.bf16.msra.mxu0 0
  %260 = vmatprep.subr.bf16.mxu0 0
  %261 = vmatpush1.bf16.msra.mxu0 0
  %262 = vmatprep.subr.bf16.mxu0 0
  %263 = vmatpush1.bf16.msra.mxu0 0
  %264 = vmatprep.subr.bf16.mxu0 0
  %265 = vmatpush1.bf16.msra.mxu0 0
  %266 = vmatprep.mubr.bf16.mxu0 0
  %267 = vmatmul.mubr.bf16.gmra.mrb[0].mxu0 %v216
  %v268 = vpop.f32.mrb[0].mxu0
  %v269 = vadd.f32 %v57, %v268
  %v270 = vpop.f32.mrb[0].mxu0
  %v271 = vadd.f32 %v57, %v270
  %v272 = vpop.f32.mrb[0].mxu0
  %v273 = vadd.f32 %v62, %v272
  %v274 = vpop.f32.mrb[0].mxu0
  %v275 = vadd.f32 %v62, %v274
  %276 = vmatprep.mubr.bf16.mxu0 0
  %277 = vmatmul.mubr.bf16.gmra.mrb[0].mxu0 %v219
  %v278 = vpop.f32.mrb[0].mxu0
  %v279 = vadd.f32 %v67, %v278
  %v280 = vpop.f32.mrb[0].mxu0
  %v281 = vadd.f32 %v67, %v280
  %v282 = vpop.f32.mrb[0].mxu0
  %v283 = vadd.f32 %v72, %v282
  %v284 = vpop.f32.mrb[0].mxu0
  %v285 = vadd.f32 %v72, %v284
  %286 = vdwg.mxu0
  %287 = vmatprep.subr.bf16.mxu0 %v165
  %288 = vmatpush1.bf16.msra.mxu0 %v164
  %289 = vmatprep.subr.bf16.mxu0 %v169
  %290 = vmatpush1.bf16.msra.mxu0 %v168
  %291 = vmatprep.subr.bf16.mxu0 %v173
  %292 = vmatpush1.bf16.msra.mxu0 %v172
  %293 = vmatprep.subr.bf16.mxu0 %v177
  %294 = vmatpush1.bf16.msra.mxu0 %v176
  %295 = vmatprep.subr.bf16.mxu0 %v181
  %296 = vmatpush1.bf16.msra.mxu0 %v180
  %297 = vmatprep.subr.bf16.mxu0 %v185
  %298 = vmatpush1.bf16.msra.mxu0 %v184
  %299 = vmatprep.subr.bf16.mxu0 %v232
  %300 = vmatpush1.bf16.msra.mxu0 %v229
  %301 = vmatprep.subr.bf16.mxu0 0
  %302 = vmatpush1.bf16.msra.mxu0 0
  %303 = vmatprep.subr.bf16.mxu0 0
  %304 = vmatpush1.bf16.msra.mxu0 0
  %305 = vmatprep.subr.bf16.mxu0 0
  %306 = vmatpush1.bf16.msra.mxu0 0
  %307 = vmatprep.subr.bf16.mxu0 0
  %308 = vmatpush1.bf16.msra.mxu0 0
  %309 = vmatprep.subr.bf16.mxu0 0
  %310 = vmatpush1.bf16.msra.mxu0 0
  %311 = vmatprep.subr.bf16.mxu0 0
  %312 = vmatpush1.bf16.msra.mxu0 0
  %313 = vmatprep.subr.bf16.mxu0 0
  %314 = vmatpush1.bf16.msra.mxu0 0
  %315 = vmatprep.subr.bf16.mxu0 0
  %316 = vmatpush1.bf16.msra.mxu0 0
  %317 = vmatprep.subr.bf16.mxu0 0
  %318 = vmatpush1.bf16.msra.mxu0 0
  %319 = vmatprep.mubr.bf16.mxu0 0
  %320 = vmatmul.mubr.bf16.gmra.mrb[0].mxu0 %v216
  %v321 = vpop.f32.mrb[0].mxu0
  %v322 = vadd.f32 %v57, %v321
  %v323 = vpop.f32.mrb[0].mxu0
  %v324 = vadd.f32 %v57, %v323
  %v325 = vpop.f32.mrb[0].mxu0
  %v326 = vadd.f32 %v62, %v325
  %v327 = vpop.f32.mrb[0].mxu0
  %v328 = vadd.f32 %v62, %v327
  %329 = vmatprep.mubr.bf16.mxu0 0
  %330 = vmatmul.mubr.bf16.gmra.mrb[0].mxu0 %v219
  %v331 = vpop.f32.mrb[0].mxu0
  %v332 = vadd.f32 %v67, %v331
  %v333 = vpop.f32.mrb[0].mxu0
  %v334 = vadd.f32 %v67, %v333
  %v335 = vpop.f32.mrb[0].mxu0
  %v336 = vadd.f32 %v72, %v335
  %v337 = vpop.f32.mrb[0].mxu0
  %v338 = vadd.f32 %v72, %v337
  %339 = vdwg.mxu0
  %v340 = vtanh.pop %v269
  %v341 = vtanh.pop %v271
  %v342 = vtanh.pop %v322
  %v343 = vtanh.pop %v324
  %v344 = vtanh.pop %v273
  %v345 = vtanh.pop %v275
  %v346 = vtanh.pop %v326
  %v347 = vtanh.pop %v328
  %v348 = vtanh.pop %v279
  %v349 = vtanh.pop %v281
  %v350 = vtanh.pop %v332
  %v351 = vtanh.pop %v334
  %v352 = vtanh.pop %v283
  %v353 = vtanh.pop %v285
  %v354 = vtanh.pop %v336
  %v355 = vtanh.pop %v338
  %v356 = vmul.f32 %v348, 0.5
  %v357 = vmul.f32 %v349, 0.5
  %v358 = vmul.f32 %v350, 0.5
  %v359 = vmul.f32 %v351, 0.5
  %v360 = vmul.f32 %v352, 0.5
  %v361 = vmul.f32 %v353, 0.5
  %v362 = vmul.f32 %v354, 0.5
  %v363 = vmul.f32 %v355, 0.5
  %v364 = vmul.f32 %v356, 1.442695
  %v365 = vpow.pop %v364
  %v366 = vmul.f32 %v357, 1.442695
  %v367 = vpow.pop %v366
  %v368 = vmul.f32 %v358, 1.442695
  %v369 = vpow.pop %v368
  %v370 = vmul.f32 %v359, 1.442695
  %v371 = vpow.pop %v370
  %v372 = vmul.f32 %v360, 1.442695
  %v373 = vpow.pop %v372
  %v374 = vmul.f32 %v361, 1.442695
  %v375 = vpow.pop %v374
  %v376 = vmul.f32 %v362, 1.442695
  %v377 = vpow.pop %v376
  %v378 = vmul.f32 %v363, 1.442695
  %v379 = vpow.pop %v378
  %v380 = vld [vmem:[%s3] sm:$0xff]
  %v381 = vld [vmem:[%s3 + $0x8] sm:$0xff]
  %v382 = vld [vmem:[%s3 + $0x10] sm:$0xff]
  %v383 = vld [vmem:[%s3 + $0x18] sm:$0xff]
  %v384 = vld [vmem:[%s3 + $0x20] sm:$0xff]
  %v385 = vld [vmem:[%s3 + $0x28] sm:$0xff]
  %v386 = vld [vmem:[%s3 + $0x30] sm:$0xff]
  %v387 = vld [vmem:[%s3 + $0x38] sm:$0xff]
  %v388 = vmul.f32 %v380, 0.1
  %v389 = vmul.f32 %v381, 0.1
  %v390 = vmul.f32 %v382, 0.1
  %v391 = vmul.f32 %v383, 0.1
  %v392 = vmul.f32 %v384, 0.1
  %v393 = vmul.f32 %v385, 0.1
  %v394 = vmul.f32 %v386, 0.1
  %v395 = vmul.f32 %v387, 0.1
  %v396 = vmul.f32 %v365, %v388
  %v397 = vmul.f32 %v367, %v389
  %v398 = vmul.f32 %v369, %v390
  %v399 = vmul.f32 %v371, %v391
  %v400 = vmul.f32 %v373, %v392
  %v401 = vmul.f32 %v375, %v393
  %v402 = vmul.f32 %v377, %v394
  %v403 = vmul.f32 %v379, %v395
  %v404 = vadd.f32 %v340, %v396
  %v405 = vadd.f32 %v341, %v397
  %v406 = vadd.f32 %v342, %v398
  %v407 = vadd.f32 %v343, %v399
  %v408 = vadd.f32 %v344, %v400
  %v409 = vadd.f32 %v345, %v401
  %v410 = vadd.f32 %v346, %v402
  %v411 = vadd.f32 %v347, %v403
  %412 = vst [vmem:[%s4] sm:$0xff] %v404
  %413 = vst [vmem:[%s4 + $0x8] sm:$0xff] %v405
  %414 = vst [vmem:[%s4 + $0x10] sm:$0xff] %v406
  %415 = vst [vmem:[%s4 + $0x18] sm:$0xff] %v407
  %416 = vst [vmem:[%s4 + $0x20] sm:$0xff] %v408
  %417 = vst [vmem:[%s4 + $0x28] sm:$0xff] %v409
  %418 = vst [vmem:[%s4 + $0x30] sm:$0xff] %v410
  %419 = vst [vmem:[%s4 + $0x38] sm:$0xff] %v411
  %v420 = vadd.f32 %v348, 1.0
  %v421 = vadd.f32 %v349, 1.0
  %v422 = vadd.f32 %v350, 1.0
  %v423 = vadd.f32 %v351, 1.0
  %v424 = vadd.f32 %v352, 1.0
  %v425 = vadd.f32 %v353, 1.0
  %v426 = vadd.f32 %v354, 1.0
  %v427 = vadd.f32 %v355, 1.0
  %v428 = vmul.f32 %v340, %v340
  %v429 = vmul.f32 %v341, %v341
  %v430 = vmul.f32 %v342, %v342
  %v431 = vmul.f32 %v343, %v343
  %v432 = vmul.f32 %v344, %v344
  %v433 = vmul.f32 %v345, %v345
  %v434 = vmul.f32 %v346, %v346
  %v435 = vmul.f32 %v347, %v347
  %v436 = vsub.f32 %v420, %v428
  %v437 = vsub.f32 %v421, %v429
  %v438 = vsub.f32 %v422, %v430
  %v439 = vsub.f32 %v423, %v431
  %v440 = vsub.f32 %v424, %v432
  %v441 = vsub.f32 %v425, %v433
  %v442 = vsub.f32 %v426, %v434
  %v443 = vsub.f32 %v427, %v435
  %v444 = vmul.f32 %v365, %v365
  %v445 = vmul.f32 %v367, %v367
  %v446 = vmul.f32 %v369, %v369
  %v447 = vmul.f32 %v371, %v371
  %v448 = vmul.f32 %v373, %v373
  %v449 = vmul.f32 %v375, %v375
  %v450 = vmul.f32 %v377, %v377
  %v451 = vmul.f32 %v379, %v379
  %v452 = vsub.f32 %v436, %v444
  %v453 = vsub.f32 %v437, %v445
  %v454 = vsub.f32 %v438, %v446
  %v455 = vsub.f32 %v439, %v447
  %v456 = vsub.f32 %v440, %v448
  %v457 = vsub.f32 %v441, %v449
  %v458 = vsub.f32 %v442, %v450
  %v459 = vsub.f32 %v443, %v451
  %v460 = vadd.f32 %v452, %v456
  %v461 = vrot.slane %v460, 4
  %v462 = vadd.f32 %v460, %v461
  %v463 = vrot.slane %v462, 2
  %v464 = vadd.f32 %v462, %v463
  %v465 = vrot.slane %v464, 1
  %v466 = vadd.f32 %v464, %v465
  %v467 = vadd.f32 %v453, %v457
  %v468 = vrot.slane %v467, 4
  %v469 = vadd.f32 %v467, %v468
  %v470 = vrot.slane %v469, 2
  %v471 = vadd.f32 %v469, %v470
  %v472 = vrot.slane %v471, 1
  %v473 = vadd.f32 %v471, %v472
  %v474 = vadd.f32 %v454, %v458
  %v475 = vrot.slane %v474, 4
  %v476 = vadd.f32 %v474, %v475
  %v477 = vrot.slane %v476, 2
  %v478 = vadd.f32 %v476, %v477
  %v479 = vrot.slane %v478, 1
  %v480 = vadd.f32 %v478, %v479
  %v481 = vadd.f32 %v455, %v459
  %v482 = vrot.slane %v481, 4
  %v483 = vadd.f32 %v481, %v482
  %v484 = vrot.slane %v483, 2
  %v485 = vadd.f32 %v483, %v484
  %v486 = vrot.slane %v485, 1
  %v487 = vadd.f32 %v485, %v486
  %v492 = vcombine.low %v466, %v473
  %v493 = vcombine.low %v480, %v487
  %v495 = vunpack.c.l.s4 1966171168
  %v496 = vunpack.c.0.s8 %v495
  %v497 = vlaneseq
  %v498 = vshrl.u32 %v497, 7
  %v499 = vsub.s32 %v496, %v498
  %v500 = vrot.slane %v492, %v499
  %v502 = vunpack.c.l.s4 1966171168
  %v503 = vunpack.c.0.s8 %v502
  %v504 = vlaneseq
  %v505 = vshrl.u32 %v504, 7
  %v506 = vsub.s32 %v503, %v505
  %v507 = vrot.slane %v493, %v506
  %v508 = vcombine.low %v500, %v507
  %v510 = vunpack.c.l.s4 1966171168
  %v511 = vunpack.c.0.s8 %v510
  %v512 = vlaneseq
  %v513 = vshrl.u32 %v512, 7
  %v514 = vsub.s32 %v511, %v513
  %v515 = vrot.slane %v508, %v514
  %v517 = vlaneseq
  %vm518 = vcmp.ge.s32.totalorder %v517, 0
  %vm519 = vcmp.lt.s32.totalorder %v517, 512
  %vm520 = vmand %vm518, %vm519
  %521 = vst.msk [vmem:[%s5] sm:$0xf] %vm520, %v515
  // Predicated region
  $region18: #{full_bayesian_dense_block.5} parent=0 // pred_check
    _
  $region19: #{full_bayesian_dense_block.5} parent=0 // pred_check_branch
    %523 = sbr.rel (0) target = $region21
  $region20: #{full_bayesian_dense_block.5} parent=0 // pred_region
    _
  $region21: #{full_bayesian_dense_block.5} parent=0 // pred_fallthru
    _
  // Predicated region
  $region22: #{full_bayesian_dense_block.5} parent=0 // pred_check
    _
  $region23: #{full_bayesian_dense_block.5} parent=0 // pred_check_branch
    %525 = sbr.rel (0) target = $region25
  $region24: #{full_bayesian_dense_block.5} parent=0 // pred_region
    _
  $region25: #{full_bayesian_dense_block.5} parent=0 // pred_fallthru
    _
  // Predicated region
  $region26: #{full_bayesian_dense_block.5} parent=0 // pred_check
    _
  $region27: #{full_bayesian_dense_block.5} parent=0 // pred_check_branch
    %527 = sbr.rel (0) target = $region29
  $region28: #{full_bayesian_dense_block.5} parent=0 // pred_region
    _
  $region29: #{full_bayesian_dense_block.5} parent=0 // pred_fallthru
    _
  // Predicated region
  $region30: #{full_bayesian_dense_block.5} parent=0 // pred_check
    _
  $region31: #{full_bayesian_dense_block.5} parent=0 // pred_check_branch
    %529 = sbr.rel (0) target = $region33
  $region32: #{full_bayesian_dense_block.5} parent=0 // pred_region
    _
  $region33: #{full_bayesian_dense_block.5} parent=0 // pred_fallthru
    _

// kernel: full_bayesian_dense_block.6
$region0: #{full_bayesian_dense_block.6}
  #allocation0 [shape = 'u32[]', space=smem, size = 0x4, offset = 0x4, fixed_abs, tag = 'smem constant byte address 0x4 - core index']
  #allocation1 [shape = 'u32[144,128]{1,0:T(1,128)}', space=vmem, size = 0x12000, scoped, tag = 'internal scratch']
  %s0 = inlined_call_operand.vmem [shape: bf16[100,512], index: 0, kind: input, shape index: {}]
  %s1 = inlined_call_operand.vmem [shape: bf16[400,512], index: 1, kind: input, shape index: {}]
  %s2 = inlined_call_operand.vmem [shape: bf16[32,100], index: 2, kind: input, shape index: {}]
  %s3 = inlined_call_operand.vmem [shape: bf16[32,400], index: 3, kind: input, shape index: {}]
  %s4 = inlined_call_operand.vmem [shape: f32[32,1], index: 4, kind: input, shape index: {}]
  %s5 = inlined_call_operand.vmem [shape: f32[16,512], index: 5, kind: input, shape index: {}]
  %s6 = inlined_call_operand.vmem [shape: f32[16,512], index: 6, kind: output, shape index: {0}]
  %s7 = inlined_call_operand.vmem [shape: f32[1,1,512], index: 7, kind: output, shape index: {1}]
  %8 = xla_tuple %s6, %s7
  %s9 = sld [smem:[#allocation0]]
  $region42: #{full_bayesian_dense_block.6} parent=0
    _
  %s11 = ssub.s32 1, %s9
  %s12 = scalar_select 0, %s11, %s9
  // Predicated region
  $region2: #{full_bayesian_dense_block.6} parent=0 // pred_check
    _
  $region3: #{full_bayesian_dense_block.6} parent=0 // pred_check_branch
    %14 = sbr.rel (0) target = $region5
  $region4: #{full_bayesian_dense_block.6} parent=0 // pred_region
    _
  $region5: #{full_bayesian_dense_block.6} parent=0 // pred_fallthru
    _
  // Predicated region
  $region6: #{full_bayesian_dense_block.6} parent=0 // pred_check
    _
  $region7: #{full_bayesian_dense_block.6} parent=0 // pred_check_branch
    %16 = sbr.rel (0) target = $region9
  $region8: #{full_bayesian_dense_block.6} parent=0 // pred_region
    _
  $region9: #{full_bayesian_dense_block.6} parent=0 // pred_fallthru
    _
  // Predicated region
  $region10: #{full_bayesian_dense_block.6} parent=0 // pred_check
    _
  $region11: #{full_bayesian_dense_block.6} parent=0 // pred_check_branch
    %18 = sbr.rel (0) target = $region13
  $region12: #{full_bayesian_dense_block.6} parent=0 // pred_region
    _
  $region13: #{full_bayesian_dense_block.6} parent=0 // pred_fallthru
    _
  // Predicated region
  $region14: #{full_bayesian_dense_block.6} parent=0 // pred_check
    _
  $region15: #{full_bayesian_dense_block.6} parent=0 // pred_check_branch
    %20 = sbr.rel (0) target = $region17
  $region16: #{full_bayesian_dense_block.6} parent=0 // pred_region
    _
  $region17: #{full_bayesian_dense_block.6} parent=0 // pred_fallthru
    _
  // Predicated region
  $region18: #{full_bayesian_dense_block.6} parent=0 // pred_check
    _
  $region19: #{full_bayesian_dense_block.6} parent=0 // pred_check_branch
    %22 = sbr.rel (0) target = $region21
  $region20: #{full_bayesian_dense_block.6} parent=0 // pred_region
    _
  $region21: #{full_bayesian_dense_block.6} parent=0 // pred_fallthru
    _
  // Predicated region
  $region22: #{full_bayesian_dense_block.6} parent=0 // pred_check
    _
  $region23: #{full_bayesian_dense_block.6} parent=0 // pred_check_branch
    %24 = sbr.rel (0) target = $region25
  $region24: #{full_bayesian_dense_block.6} parent=0 // pred_region
    _
  $region25: #{full_bayesian_dense_block.6} parent=0 // pred_fallthru
    _
  %v26 = vld [vmem:[%s2] sm:$0xf]
  %v27 = vld [vmem:[%s2 + $0x4] sm:$0xf]
  %v28 = vld [vmem:[%s2 + $0x8] sm:$0xf]
  %v29 = vld [vmem:[%s2 + $0xc] sm:$0xf]
  %v30 = vld [vmem:[%s0] sm:$0xff]
  %v31 = vld [vmem:[%s0 + $0x8] sm:$0xff]
  %v32 = vld [vmem:[%s0 + $0x10] sm:$0xff]
  %v33 = vld [vmem:[%s0 + $0x18] sm:$0xff]
  %v34 = vld [vmem:[%s0 + $0x20] sm:$0xff]
  %v35 = vld [vmem:[%s0 + $0x28] sm:$0xff]
  %v36 = vld [vmem:[%s0 + $0x30] sm:$0xff]
  %v37 = vld [vmem:[%s0 + $0x38] sm:$0xff]
  %v38 = vld [vmem:[%s0 + $0x40] sm:$0xff]
  %v39 = vld [vmem:[%s0 + $0x48] sm:$0xff]
  %v40 = vld [vmem:[%s0 + $0x50] sm:$0xff]
  %v41 = vld [vmem:[%s0 + $0x58] sm:$0xff]
  %v42 = vld [vmem:[%s0 + $0x60] sm:$0xff]
  %v43 = vld [vmem:[%s0 + $0x68] sm:$0xff]
  %v44 = vld [vmem:[%s0 + $0x70] sm:$0xff]
  %v45 = vld [vmem:[%s0 + $0x78] sm:$0xff]
  %v46 = vld [vmem:[%s0 + $0x80] sm:$0xff]
  %v47 = vld [vmem:[%s0 + $0x88] sm:$0xff]
  %v48 = vld [vmem:[%s0 + $0x90] sm:$0xff]
  %v49 = vld [vmem:[%s0 + $0x98] sm:$0xff]
  %v50 = vld [vmem:[%s0 + $0xa0] sm:$0xff]
  %v51 = vld [vmem:[%s0 + $0xa8] sm:$0xff]
  %v52 = vld [vmem:[%s0 + $0xb0] sm:$0xff]
  %v53 = vld [vmem:[%s0 + $0xb8] sm:$0xff]
  %v54 = vld [vmem:[%s0 + $0xc0] sm:$0x33]
  %v55 = vld [vmem:[%s0 + $0xc8] sm:$0x33]
  %v56 = vld [vmem:[%s3] sm:$0xff]
  %v57 = vld [vmem:[%s3 + $0x8] sm:$0xff]
  %v58 = vld [vmem:[%s3 + $0x10] sm:$0xff]
  %v59 = vld [vmem:[%s3 + $0x18] sm:$0xff]
  %v60 = vld [vmem:[%s3 + $0x20] sm:$0xff]
  %v61 = vld [vmem:[%s3 + $0x28] sm:$0xff]
  %v62 = vld [vmem:[%s3 + $0x30] sm:$0xff]
  %v63 = vld [vmem:[%s3 + $0x38] sm:$0xff]
  %v64 = vld [vmem:[%s1] sm:$0xff]
  %v65 = vld [vmem:[%s1 + $0x8] sm:$0xff]
  %v66 = vld [vmem:[%s1 + $0x10] sm:$0xff]
  %v67 = vld [vmem:[%s1 + $0x18] sm:$0xff]
  %v68 = vld [vmem:[%s1 + $0x20] sm:$0xff]
  %v69 = vld [vmem:[%s1 + $0x28] sm:$0xff]
  %v70 = vld [vmem:[%s1 + $0x30] sm:$0xff]
  %v71 = vld [vmem:[%s1 + $0x38] sm:$0xff]
  %v72 = vld [vmem:[%s1 + $0x40] sm:$0xff]
  %v73 = vld [vmem:[%s1 + $0x48] sm:$0xff]
  %v74 = vld [vmem:[%s1 + $0x50] sm:$0xff]
  %v75 = vld [vmem:[%s1 + $0x58] sm:$0xff]
  %v76 = vld [vmem:[%s1 + $0x60] sm:$0xff]
  %v77 = vld [vmem:[%s1 + $0x68] sm:$0xff]
  %v78 = vld [vmem:[%s1 + $0x70] sm:$0xff]
  %v79 = vld [vmem:[%s1 + $0x78] sm:$0xff]
  %v80 = vld [vmem:[%s1 + $0x80] sm:$0xff]
  %v81 = vld [vmem:[%s1 + $0x88] sm:$0xff]
  %v82 = vld [vmem:[%s1 + $0x90] sm:$0xff]
  %v83 = vld [vmem:[%s1 + $0x98] sm:$0xff]
  %v84 = vld [vmem:[%s1 + $0xa0] sm:$0xff]
  %v85 = vld [vmem:[%s1 + $0xa8] sm:$0xff]
  %v86 = vld [vmem:[%s1 + $0xb0] sm:$0xff]
  %v87 = vld [vmem:[%s1 + $0xb8] sm:$0xff]
  %v88 = vld [vmem:[%s1 + $0xc0] sm:$0xff]
  %v89 = vld [vmem:[%s1 + $0xc8] sm:$0xff]
  %v90 = vld [vmem:[%s1 + $0xd0] sm:$0xff]
  %v91 = vld [vmem:[%s1 + $0xd8] sm:$0xff]
  %v92 = vld [vmem:[%s1 + $0xe0] sm:$0xff]
  %v93 = vld [vmem:[%s1 + $0xe8] sm:$0xff]
  %v94 = vld [vmem:[%s1 + $0xf0] sm:$0xff]
  %v95 = vld [vmem:[%s1 + $0xf8] sm:$0xff]
  %v96 = vld [vmem:[%s1 + $0x100] sm:$0xff]
  %v97 = vld [vmem:[%s1 + $0x108] sm:$0xff]
  %v98 = vld [vmem:[%s1 + $0x110] sm:$0xff]
  %v99 = vld [vmem:[%s1 + $0x118] sm:$0xff]
  %v100 = vld [vmem:[%s1 + $0x120] sm:$0xff]
  %v101 = vld [vmem:[%s1 + $0x128] sm:$0xff]
  %v102 = vld [vmem:[%s1 + $0x130] sm:$0xff]
  %v103 = vld [vmem:[%s1 + $0x138] sm:$0xff]
  %v104 = vld [vmem:[%s1 + $0x140] sm:$0xff]
  %v105 = vld [vmem:[%s1 + $0x148] sm:$0xff]
  %v106 = vld [vmem:[%s1 + $0x150] sm:$0xff]
  %v107 = vld [vmem:[%s1 + $0x158] sm:$0xff]
  %v108 = vld [vmem:[%s1 + $0x160] sm:$0xff]
  %v109 = vld [vmem:[%s1 + $0x168] sm:$0xff]
  %v110 = vld [vmem:[%s1 + $0x170] sm:$0xff]
  %v111 = vld [vmem:[%s1 + $0x178] sm:$0xff]
  %v112 = vld [vmem:[%s1 + $0x180] sm:$0xff]
  %v113 = vld [vmem:[%s1 + $0x188] sm:$0xff]
  %v114 = vld [vmem:[%s1 + $0x190] sm:$0xff]
  %v115 = vld [vmem:[%s1 + $0x198] sm:$0xff]
  %v116 = vld [vmem:[%s1 + $0x1a0] sm:$0xff]
  %v117 = vld [vmem:[%s1 + $0x1a8] sm:$0xff]
  %v118 = vld [vmem:[%s1 + $0x1b0] sm:$0xff]
  %v119 = vld [vmem:[%s1 + $0x1b8] sm:$0xff]
  %v120 = vld [vmem:[%s1 + $0x1c0] sm:$0xff]
  %v121 = vld [vmem:[%s1 + $0x1c8] sm:$0xff]
  %v122 = vld [vmem:[%s1 + $0x1d0] sm:$0xff]
  %v123 = vld [vmem:[%s1 + $0x1d8] sm:$0xff]
  %v124 = vld [vmem:[%s1 + $0x1e0] sm:$0xff]
  %v125 = vld [vmem:[%s1 + $0x1e8] sm:$0xff]
  %v126 = vld [vmem:[%s1 + $0x1f0] sm:$0xff]
  %v127 = vld [vmem:[%s1 + $0x1f8] sm:$0xff]
  %v128 = vld [vmem:[%s1 + $0x200] sm:$0xff]
  %v129 = vld [vmem:[%s1 + $0x208] sm:$0xff]
  %v130 = vld [vmem:[%s1 + $0x210] sm:$0xff]
  %v131 = vld [vmem:[%s1 + $0x218] sm:$0xff]
  %v132 = vld [vmem:[%s1 + $0x220] sm:$0xff]
  %v133 = vld [vmem:[%s1 + $0x228] sm:$0xff]
  %v134 = vld [vmem:[%s1 + $0x230] sm:$0xff]
  %v135 = vld [vmem:[%s1 + $0x238] sm:$0xff]
  %v136 = vld [vmem:[%s1 + $0x240] sm:$0xff]
  %v137 = vld [vmem:[%s1 + $0x248] sm:$0xff]
  %v138 = vld [vmem:[%s1 + $0x250] sm:$0xff]
  %v139 = vld [vmem:[%s1 + $0x258] sm:$0xff]
  %v140 = vld [vmem:[%s1 + $0x260] sm:$0xff]
  %v141 = vld [vmem:[%s1 + $0x268] sm:$0xff]
  %v142 = vld [vmem:[%s1 + $0x270] sm:$0xff]
  %v143 = vld [vmem:[%s1 + $0x278] sm:$0xff]
  %v144 = vld [vmem:[%s1 + $0x280] sm:$0xff]
  %v145 = vld [vmem:[%s1 + $0x288] sm:$0xff]
  %v146 = vld [vmem:[%s1 + $0x290] sm:$0xff]
  %v147 = vld [vmem:[%s1 + $0x298] sm:$0xff]
  %v148 = vld [vmem:[%s1 + $0x2a0] sm:$0xff]
  %v149 = vld [vmem:[%s1 + $0x2a8] sm:$0xff]
  %v150 = vld [vmem:[%s1 + $0x2b0] sm:$0xff]
  %v151 = vld [vmem:[%s1 + $0x2b8] sm:$0xff]
  %v152 = vld [vmem:[%s1 + $0x2c0] sm:$0xff]
  %v153 = vld [vmem:[%s1 + $0x2c8] sm:$0xff]
  %v154 = vld [vmem:[%s1 + $0x2d0] sm:$0xff]
  %v155 = vld [vmem:[%s1 + $0x2d8] sm:$0xff]
  %v156 = vld [vmem:[%s1 + $0x2e0] sm:$0xff]
  %v157 = vld [vmem:[%s1 + $0x2e8] sm:$0xff]
  %v158 = vld [vmem:[%s1 + $0x2f0] sm:$0xff]
  %v159 = vld [vmem:[%s1 + $0x2f8] sm:$0xff]
  %v160 = vld [vmem:[%s1 + $0x300] sm:$0xff]
  %v161 = vld [vmem:[%s1 + $0x308] sm:$0xff]
  %v162 = vld [vmem:[%s1 + $0x310] sm:$0xff]
  %v163 = vld [vmem:[%s1 + $0x318] sm:$0xff]
  %v172 = vunpack.c.l.b16 %v56
  %v173 = vunpack.c.h.b16 %v56
  %v174 = vunpack.c.l.b16 %v57
  %v175 = vunpack.c.h.b16 %v57
  %v176 = vunpack.c.l.b16 %v58
  %v177 = vunpack.c.h.b16 %v58
  %v178 = vunpack.c.l.b16 %v59
  %v179 = vunpack.c.h.b16 %v59
  %v180 = vunpack.c.l.b16 %v60
  %v181 = vunpack.c.h.b16 %v60
  %v182 = vunpack.c.l.b16 %v61
  %v183 = vunpack.c.h.b16 %v61
  %v184 = vunpack.c.l.b16 %v62
  %v185 = vunpack.c.h.b16 %v62
  %v186 = vunpack.c.l.b16 %v63
  %v187 = vunpack.c.h.b16 %v63
  %v188 = vpack.c.b16 %v176, %v172
  %v189 = vpack.c.b16 %v177, %v173
  %v190 = vpack.c.b16 %v178, %v174
  %v191 = vpack.c.b16 %v179, %v175
  %v192 = vpack.c.b16 %v184, %v180
  %v193 = vpack.c.b16 %v185, %v181
  %v194 = vpack.c.b16 %v186, %v182
  %v195 = vpack.c.b16 %v187, %v183
  %v302 = vunpack.c.l.b16 %v64
  %v303 = vunpack.c.h.b16 %v64
  %v304 = vunpack.c.l.b16 %v65
  %v305 = vunpack.c.h.b16 %v65
  %v306 = vunpack.c.l.b16 %v66
  %v307 = vunpack.c.h.b16 %v66
  %v308 = vunpack.c.l.b16 %v67
  %v309 = vunpack.c.h.b16 %v67
  %v310 = vunpack.c.l.b16 %v68
  %v311 = vunpack.c.h.b16 %v68
  %v312 = vunpack.c.l.b16 %v69
  %v313 = vunpack.c.h.b16 %v69
  %v314 = vunpack.c.l.b16 %v70
  %v315 = vunpack.c.h.b16 %v70
  %v316 = vunpack.c.l.b16 %v71
  %v317 = vunpack.c.h.b16 %v71
  %v318 = vunpack.c.l.b16 %v72
  %v319 = vunpack.c.h.b16 %v72
  %v320 = vunpack.c.l.b16 %v73
  %v321 = vunpack.c.h.b16 %v73
  %v322 = vunpack.c.l.b16 %v74
  %v323 = vunpack.c.h.b16 %v74
  %v324 = vunpack.c.l.b16 %v75
  %v325 = vunpack.c.h.b16 %v75
  %v326 = vunpack.c.l.b16 %v76
  %v327 = vunpack.c.h.b16 %v76
  %v328 = vunpack.c.l.b16 %v77
  %v329 = vunpack.c.h.b16 %v77
  %v330 = vunpack.c.l.b16 %v78
  %v331 = vunpack.c.h.b16 %v78
  %v332 = vunpack.c.l.b16 %v79
  %v333 = vunpack.c.h.b16 %v79
  %v334 = vunpack.c.l.b16 %v80
  %v335 = vunpack.c.h.b16 %v80
  %v336 = vunpack.c.l.b16 %v81
  %v337 = vunpack.c.h.b16 %v81
  %v338 = vunpack.c.l.b16 %v82
  %v339 = vunpack.c.h.b16 %v82
  %v340 = vunpack.c.l.b16 %v83
  %v341 = vunpack.c.h.b16 %v83
  %v342 = vunpack.c.l.b16 %v84
  %v343 = vunpack.c.h.b16 %v84
  %v344 = vunpack.c.l.b16 %v85
  %v345 = vunpack.c.h.b16 %v85
  %v346 = vunpack.c.l.b16 %v86
  %v347 = vunpack.c.h.b16 %v86
  %v348 = vunpack.c.l.b16 %v87
  %v349 = vunpack.c.h.b16 %v87
  %v350 = vunpack.c.l.b16 %v88
  %v351 = vunpack.c.h.b16 %v88
  %v352 = vunpack.c.l.b16 %v89
  %v353 = vunpack.c.h.b16 %v89
  %v354 = vunpack.c.l.b16 %v90
  %v355 = vunpack.c.h.b16 %v90
  %v356 = vunpack.c.l.b16 %v91
  %v357 = vunpack.c.h.b16 %v91
  %v358 = vunpack.c.l.b16 %v92
  %v359 = vunpack.c.h.b16 %v92
  %v360 = vunpack.c.l.b16 %v93
  %v361 = vunpack.c.h.b16 %v93
  %v362 = vunpack.c.l.b16 %v94
  %v363 = vunpack.c.h.b16 %v94
  %v364 = vunpack.c.l.b16 %v95
  %v365 = vunpack.c.h.b16 %v95
  %v366 = vunpack.c.l.b16 %v96
  %v367 = vunpack.c.h.b16 %v96
  %v368 = vunpack.c.l.b16 %v97
  %v369 = vunpack.c.h.b16 %v97
  %v370 = vunpack.c.l.b16 %v98
  %v371 = vunpack.c.h.b16 %v98
  %v372 = vunpack.c.l.b16 %v99
  %v373 = vunpack.c.h.b16 %v99
  %v374 = vunpack.c.l.b16 %v100
  %v375 = vunpack.c.h.b16 %v100
  %v376 = vunpack.c.l.b16 %v101
  %v377 = vunpack.c.h.b16 %v101
  %v378 = vunpack.c.l.b16 %v102
  %v379 = vunpack.c.h.b16 %v102
  %v380 = vunpack.c.l.b16 %v103
  %v381 = vunpack.c.h.b16 %v103
  %v382 = vunpack.c.l.b16 %v104
  %v383 = vunpack.c.h.b16 %v104
  %v384 = vunpack.c.l.b16 %v105
  %v385 = vunpack.c.h.b16 %v105
  %v386 = vunpack.c.l.b16 %v106
  %v387 = vunpack.c.h.b16 %v106
  %v388 = vunpack.c.l.b16 %v107
  %v389 = vunpack.c.h.b16 %v107
  %v390 = vunpack.c.l.b16 %v108
  %v391 = vunpack.c.h.b16 %v108
  %v392 = vunpack.c.l.b16 %v109
  %v393 = vunpack.c.h.b16 %v109
  %v394 = vunpack.c.l.b16 %v110
  %v395 = vunpack.c.h.b16 %v110
  %v396 = vunpack.c.l.b16 %v111
  %v397 = vunpack.c.h.b16 %v111
  %v398 = vunpack.c.l.b16 %v112
  %v399 = vunpack.c.h.b16 %v112
  %v400 = vunpack.c.l.b16 %v113
  %v401 = vunpack.c.h.b16 %v113
  %v402 = vunpack.c.l.b16 %v114
  %v403 = vunpack.c.h.b16 %v114
  %v404 = vunpack.c.l.b16 %v115
  %v405 = vunpack.c.h.b16 %v115
  %v406 = vunpack.c.l.b16 %v116
  %v407 = vunpack.c.h.b16 %v116
  %v408 = vunpack.c.l.b16 %v117
  %v409 = vunpack.c.h.b16 %v117
  %v410 = vunpack.c.l.b16 %v118
  %v411 = vunpack.c.h.b16 %v118
  %v412 = vunpack.c.l.b16 %v119
  %v413 = vunpack.c.h.b16 %v119
  %v414 = vunpack.c.l.b16 %v120
  %v415 = vunpack.c.h.b16 %v120
  %v416 = vunpack.c.l.b16 %v121
  %v417 = vunpack.c.h.b16 %v121
  %v418 = vunpack.c.l.b16 %v122
  %v419 = vunpack.c.h.b16 %v122
  %v420 = vunpack.c.l.b16 %v123
  %v421 = vunpack.c.h.b16 %v123
  %v422 = vunpack.c.l.b16 %v124
  %v423 = vunpack.c.h.b16 %v124
  %v424 = vunpack.c.l.b16 %v125
  %v425 = vunpack.c.h.b16 %v125
  %v426 = vunpack.c.l.b16 %v126
  %v427 = vunpack.c.h.b16 %v126
  %v428 = vunpack.c.l.b16 %v127
  %v429 = vunpack.c.h.b16 %v127
  %v430 = vunpack.c.l.b16 %v128
  %v431 = vunpack.c.h.b16 %v128
  %v432 = vunpack.c.l.b16 %v129
  %v433 = vunpack.c.h.b16 %v129
  %v434 = vunpack.c.l.b16 %v130
  %v435 = vunpack.c.h.b16 %v130
  %v436 = vunpack.c.l.b16 %v131
  %v437 = vunpack.c.h.b16 %v131
  %v438 = vunpack.c.l.b16 %v132
  %v439 = vunpack.c.h.b16 %v132
  %v440 = vunpack.c.l.b16 %v133
  %v441 = vunpack.c.h.b16 %v133
  %v442 = vunpack.c.l.b16 %v134
  %v443 = vunpack.c.h.b16 %v134
  %v444 = vunpack.c.l.b16 %v135
  %v445 = vunpack.c.h.b16 %v135
  %v446 = vunpack.c.l.b16 %v136
  %v447 = vunpack.c.h.b16 %v136
  %v448 = vunpack.c.l.b16 %v137
  %v449 = vunpack.c.h.b16 %v137
  %v450 = vunpack.c.l.b16 %v138
  %v451 = vunpack.c.h.b16 %v138
  %v452 = vunpack.c.l.b16 %v139
  %v453 = vunpack.c.h.b16 %v139
  %v454 = vunpack.c.l.b16 %v140
  %v455 = vunpack.c.h.b16 %v140
  %v456 = vunpack.c.l.b16 %v141
  %v457 = vunpack.c.h.b16 %v141
  %v458 = vunpack.c.l.b16 %v142
  %v459 = vunpack.c.h.b16 %v142
  %v460 = vunpack.c.l.b16 %v143
  %v461 = vunpack.c.h.b16 %v143
  %v462 = vunpack.c.l.b16 %v144
  %v463 = vunpack.c.h.b16 %v144
  %v464 = vunpack.c.l.b16 %v145
  %v465 = vunpack.c.h.b16 %v145
  %v466 = vunpack.c.l.b16 %v146
  %v467 = vunpack.c.h.b16 %v146
  %v468 = vunpack.c.l.b16 %v147
  %v469 = vunpack.c.h.b16 %v147
  %v470 = vunpack.c.l.b16 %v148
  %v471 = vunpack.c.h.b16 %v148
  %v472 = vunpack.c.l.b16 %v149
  %v473 = vunpack.c.h.b16 %v149
  %v474 = vunpack.c.l.b16 %v150
  %v475 = vunpack.c.h.b16 %v150
  %v476 = vunpack.c.l.b16 %v151
  %v477 = vunpack.c.h.b16 %v151
  %v478 = vunpack.c.l.b16 %v152
  %v479 = vunpack.c.h.b16 %v152
  %v480 = vunpack.c.l.b16 %v153
  %v481 = vunpack.c.h.b16 %v153
  %v482 = vunpack.c.l.b16 %v154
  %v483 = vunpack.c.h.b16 %v154
  %v484 = vunpack.c.l.b16 %v155
  %v485 = vunpack.c.h.b16 %v155
  %v486 = vunpack.c.l.b16 %v156
  %v487 = vunpack.c.h.b16 %v156
  %v488 = vunpack.c.l.b16 %v157
  %v489 = vunpack.c.h.b16 %v157
  %v490 = vunpack.c.l.b16 %v158
  %v491 = vunpack.c.h.b16 %v158
  %v492 = vunpack.c.l.b16 %v159
  %v493 = vunpack.c.h.b16 %v159
  %v494 = vunpack.c.l.b16 %v160
  %v495 = vunpack.c.h.b16 %v160
  %v496 = vunpack.c.l.b16 %v161
  %v497 = vunpack.c.h.b16 %v161
  %v498 = vunpack.c.l.b16 %v162
  %v499 = vunpack.c.h.b16 %v162
  %v500 = vunpack.c.l.b16 %v163
  %v501 = vunpack.c.h.b16 %v163
  %v502 = vpack.c.b16 %v306, %v302
  %v503 = vpack.c.b16 %v307, %v303
  %v504 = vpack.c.b16 %v308, %v304
  %v505 = vpack.c.b16 %v309, %v305
  %v506 = vpack.c.b16 %v314, %v310
  %v507 = vpack.c.b16 %v315, %v311
  %v508 = vpack.c.b16 %v316, %v312
  %v509 = vpack.c.b16 %v317, %v313
  %v510 = vpack.c.b16 %v322, %v318
  %v511 = vpack.c.b16 %v323, %v319
  %v512 = vpack.c.b16 %v324, %v320
  %v513 = vpack.c.b16 %v325, %v321
  %v514 = vpack.c.b16 %v330, %v326
  %v515 = vpack.c.b16 %v331, %v327
  %v516 = vpack.c.b16 %v332, %v328
  %v517 = vpack.c.b16 %v333, %v329
  %v518 = vpack.c.b16 %v338, %v334
  %v519 = vpack.c.b16 %v339, %v335
  %v520 = vpack.c.b16 %v340, %v336
  %v521 = vpack.c.b16 %v341, %v337
  %v522 = vpack.c.b16 %v346, %v342
  %v523 = vpack.c.b16 %v347, %v343
  %v524 = vpack.c.b16 %v348, %v344
  %v525 = vpack.c.b16 %v349, %v345
  %v526 = vpack.c.b16 %v354, %v350
  %v527 = vpack.c.b16 %v355, %v351
  %v528 = vpack.c.b16 %v356, %v352
  %v529 = vpack.c.b16 %v357, %v353
  %v530 = vpack.c.b16 %v362, %v358
  %v531 = vpack.c.b16 %v363, %v359
  %v532 = vpack.c.b16 %v364, %v360
  %v533 = vpack.c.b16 %v365, %v361
  %v534 = vpack.c.b16 %v370, %v366
  %v535 = vpack.c.b16 %v371, %v367
  %v536 = vpack.c.b16 %v372, %v368
  %v537 = vpack.c.b16 %v373, %v369
  %v538 = vpack.c.b16 %v378, %v374
  %v539 = vpack.c.b16 %v379, %v375
  %v540 = vpack.c.b16 %v380, %v376
  %v541 = vpack.c.b16 %v381, %v377
  %v542 = vpack.c.b16 %v386, %v382
  %v543 = vpack.c.b16 %v387, %v383
  %v544 = vpack.c.b16 %v388, %v384
  %v545 = vpack.c.b16 %v389, %v385
  %v546 = vpack.c.b16 %v394, %v390
  %v547 = vpack.c.b16 %v395, %v391
  %v548 = vpack.c.b16 %v396, %v392
  %v549 = vpack.c.b16 %v397, %v393
  %v550 = vpack.c.b16 %v402, %v398
  %v551 = vpack.c.b16 %v403, %v399
  %v552 = vpack.c.b16 %v404, %v400
  %v553 = vpack.c.b16 %v405, %v401
  %v554 = vpack.c.b16 %v410, %v406
  %v555 = vpack.c.b16 %v411, %v407
  %v556 = vpack.c.b16 %v412, %v408
  %v557 = vpack.c.b16 %v413, %v409
  %v558 = vpack.c.b16 %v418, %v414
  %v559 = vpack.c.b16 %v419, %v415
  %v560 = vpack.c.b16 %v420, %v416
  %v561 = vpack.c.b16 %v421, %v417
  %v562 = vpack.c.b16 %v426, %v422
  %v563 = vpack.c.b16 %v427, %v423
  %v564 = vpack.c.b16 %v428, %v424
  %v565 = vpack.c.b16 %v429, %v425
  %v566 = vpack.c.b16 %v434, %v430
  %v567 = vpack.c.b16 %v435, %v431
  %v568 = vpack.c.b16 %v436, %v432
  %v569 = vpack.c.b16 %v437, %v433
  %v570 = vpack.c.b16 %v442, %v438
  %v571 = vpack.c.b16 %v443, %v439
  %v572 = vpack.c.b16 %v444, %v440
  %v573 = vpack.c.b16 %v445, %v441
  %v574 = vpack.c.b16 %v450, %v446
  %v575 = vpack.c.b16 %v451, %v447
  %v576 = vpack.c.b16 %v452, %v448
  %v577 = vpack.c.b16 %v453, %v449
  %v578 = vpack.c.b16 %v458, %v454
  %v579 = vpack.c.b16 %v459, %v455
  %v580 = vpack.c.b16 %v460, %v456
  %v581 = vpack.c.b16 %v461, %v457
  %v582 = vpack.c.b16 %v466, %v462
  %v583 = vpack.c.b16 %v467, %v463
  %v584 = vpack.c.b16 %v468, %v464
  %v585 = vpack.c.b16 %v469, %v465
  %v586 = vpack.c.b16 %v474, %v470
  %v587 = vpack.c.b16 %v475, %v471
  %v588 = vpack.c.b16 %v476, %v472
  %v589 = vpack.c.b16 %v477, %v473
  %v590 = vpack.c.b16 %v482, %v478
  %v591 = vpack.c.b16 %v483, %v479
  %v592 = vpack.c.b16 %v484, %v480
  %v593 = vpack.c.b16 %v485, %v481
  %v594 = vpack.c.b16 %v490, %v486
  %v595 = vpack.c.b16 %v491, %v487
  %v596 = vpack.c.b16 %v492, %v488
  %v597 = vpack.c.b16 %v493, %v489
  %v598 = vpack.c.b16 %v498, %v494
  %v599 = vpack.c.b16 %v499, %v495
  %v600 = vpack.c.b16 %v500, %v496
  %v601 = vpack.c.b16 %v501, %v497
  %vm702 = vcmask 130048
  %v704 = vsel %vm702, %v191, 0
  %v707 = vsel %vm702, %v195, 0
  %709 = vmatprep.subr.bf16.mxu0 %v503
  %710 = vmatpush1.bf16.msra.mxu0 %v502
  %711 = vmatprep.subr.bf16.mxu0 %v507
  %712 = vmatpush1.bf16.msra.mxu0 %v506
  %713 = vmatprep.subr.bf16.mxu0 %v511
  %714 = vmatpush1.bf16.msra.mxu0 %v510
  %715 = vmatprep.subr.bf16.mxu0 %v515
  %716 = vmatpush1.bf16.msra.mxu0 %v514
  %717 = vmatprep.subr.bf16.mxu0 %v519
  %718 = vmatpush1.bf16.msra.mxu0 %v518
  %719 = vmatprep.subr.bf16.mxu0 %v523
  %720 = vmatpush1.bf16.msra.mxu0 %v522
  %721 = vmatprep.subr.bf16.mxu0 %v527
  %722 = vmatpush1.bf16.msra.mxu0 %v526
  %723 = vmatprep.subr.bf16.mxu0 %v531
  %724 = vmatpush1.bf16.msra.mxu0 %v530
  %725 = vmatprep.subr.bf16.mxu0 %v535
  %726 = vmatpush1.bf16.msra.mxu0 %v534
  %727 = vmatprep.subr.bf16.mxu0 %v539
  %728 = vmatpush1.bf16.msra.mxu0 %v538
  %729 = vmatprep.subr.bf16.mxu0 %v543
  %730 = vmatpush1.bf16.msra.mxu0 %v542
  %731 = vmatprep.subr.bf16.mxu0 %v547
  %732 = vmatpush1.bf16.msra.mxu0 %v546
  %733 = vmatprep.subr.bf16.mxu0 %v551
  %734 = vmatpush1.bf16.msra.mxu0 %v550
  %735 = vmatprep.subr.bf16.mxu0 %v555
  %736 = vmatpush1.bf16.msra.mxu0 %v554
  %737 = vmatprep.subr.bf16.mxu0 %v559
  %738 = vmatpush1.bf16.msra.mxu0 %v558
  %739 = vmatprep.subr.bf16.mxu0 %v563
  %740 = vmatpush1.bf16.msra.mxu0 %v562
  %741 = vmatprep.mubr.bf16.mxu0 %v189
  %742 = vmatmul.mubr.bf16.gmra.mrb[0].mxu0 %v188
  %v743 = vpop.f32.mrb[0].mxu0
  %v744 = vadd.f32 0.0, %v743
  %v745 = vpop.f32.mrb[0].mxu0
  %v746 = vadd.f32 0.0, %v745
  %v747 = vpop.f32.mrb[0].mxu0
  %v748 = vadd.f32 0.0, %v747
  %v749 = vpop.f32.mrb[0].mxu0
  %v750 = vadd.f32 0.0, %v749
  %751 = vmatprep.mubr.bf16.mxu0 %v193
  %752 = vmatmul.mubr.bf16.gmra.mrb[0].mxu0 %v192
  %v753 = vpop.f32.mrb[0].mxu0
  %v754 = vadd.f32 0.0, %v753
  %v755 = vpop.f32.mrb[0].mxu0
  %v756 = vadd.f32 0.0, %v755
  %v757 = vpop.f32.mrb[0].mxu0
  %v758 = vadd.f32 0.0, %v757
  %v759 = vpop.f32.mrb[0].mxu0
  %v760 = vadd.f32 0.0, %v759
  %761 = vdwg.mxu0
  %762 = vmatprep.subr.bf16.mxu0 %v567
  %763 = vmatpush1.bf16.msra.mxu0 %v566
  %764 = vmatprep.subr.bf16.mxu0 %v571
  %765 = vmatpush1.bf16.msra.mxu0 %v570
  %766 = vmatprep.subr.bf16.mxu0 %v575
  %767 = vmatpush1.bf16.msra.mxu0 %v574
  %768 = vmatprep.subr.bf16.mxu0 %v579
  %769 = vmatpush1.bf16.msra.mxu0 %v578
  %770 = vmatprep.subr.bf16.mxu0 %v583
  %771 = vmatpush1.bf16.msra.mxu0 %v582
  %772 = vmatprep.subr.bf16.mxu0 %v587
  %773 = vmatpush1.bf16.msra.mxu0 %v586
  %774 = vmatprep.subr.bf16.mxu0 %v591
  %775 = vmatpush1.bf16.msra.mxu0 %v590
  %776 = vmatprep.subr.bf16.mxu0 %v595
  %777 = vmatpush1.bf16.msra.mxu0 %v594
  %778 = vmatprep.subr.bf16.mxu0 %v599
  %779 = vmatpush1.bf16.msra.mxu0 %v598
  %780 = vmatprep.subr.bf16.mxu0 0
  %781 = vmatpush1.bf16.msra.mxu0 0
  %782 = vmatprep.subr.bf16.mxu0 0
  %783 = vmatpush1.bf16.msra.mxu0 0
  %784 = vmatprep.subr.bf16.mxu0 0
  %785 = vmatpush1.bf16.msra.mxu0 0
  %786 = vmatprep.subr.bf16.mxu0 0
  %787 = vmatpush1.bf16.msra.mxu0 0
  %788 = vmatprep.subr.bf16.mxu0 0
  %789 = vmatpush1.bf16.msra.mxu0 0
  %790 = vmatprep.subr.bf16.mxu0 0
  %791 = vmatpush1.bf16.msra.mxu0 0
  %792 = vmatprep.subr.bf16.mxu0 0
  %793 = vmatpush1.bf16.msra.mxu0 0
  %794 = vmatprep.mubr.bf16.mxu0 %v704
  %795 = vmatmul.mubr.bf16.gmra.mrb[0].mxu0 %v190
  %v796 = vpop.f32.mrb[0].mxu0
  %v797 = vadd.f32 %v744, %v796
  %v798 = vpop.f32.mrb[0].mxu0
  %v799 = vadd.f32 %v746, %v798
  %v800 = vpop.f32.mrb[0].mxu0
  %v801 = vadd.f32 %v748, %v800
  %v802 = vpop.f32.mrb[0].mxu0
  %v803 = vadd.f32 %v750, %v802
  %804 = vmatprep.mubr.bf16.mxu0 %v707
  %805 = vmatmul.mubr.bf16.gmra.mrb[0].mxu0 %v194
  %v806 = vpop.f32.mrb[0].mxu0
  %v807 = vadd.f32 %v754, %v806
  %v808 = vpop.f32.mrb[0].mxu0
  %v809 = vadd.f32 %v756, %v808
  %v810 = vpop.f32.mrb[0].mxu0
  %v811 = vadd.f32 %v758, %v810
  %v812 = vpop.f32.mrb[0].mxu0
  %v813 = vadd.f32 %v760, %v812
  %814 = vdwg.mxu0
  %815 = vmatprep.subr.bf16.mxu0 %v505
  %816 = vmatpush1.bf16.msra.mxu0 %v504
  %817 = vmatprep.subr.bf16.mxu0 %v509
  %818 = vmatpush1.bf16.msra.mxu0 %v508
  %819 = vmatprep.subr.bf16.mxu0 %v513
  %820 = vmatpush1.bf16.msra.mxu0 %v512
  %821 = vmatprep.subr.bf16.mxu0 %v517
  %822 = vmatpush1.bf16.msra.mxu0 %v516
  %823 = vmatprep.subr.bf16.mxu0 %v521
  %824 = vmatpush1.bf16.msra.mxu0 %v520
  %825 = vmatprep.subr.bf16.mxu0 %v525
  %826 = vmatpush1.bf16.msra.mxu0 %v524
  %827 = vmatprep.subr.bf16.mxu0 %v529
  %828 = vmatpush1.bf16.msra.mxu0 %v528
  %829 = vmatprep.subr.bf16.mxu0 %v533
  %830 = vmatpush1.bf16.msra.mxu0 %v532
  %831 = vmatprep.subr.bf16.mxu0 %v537
  %832 = vmatpush1.bf16.msra.mxu0 %v536
  %833 = vmatprep.subr.bf16.mxu0 %v541
  %834 = vmatpush1.bf16.msra.mxu0 %v540
  %835 = vmatprep.subr.bf16.mxu0 %v545
  %836 = vmatpush1.bf16.msra.mxu0 %v544
  %837 = vmatprep.subr.bf16.mxu0 %v549
  %838 = vmatpush1.bf16.msra.mxu0 %v548
  %839 = vmatprep.subr.bf16.mxu0 %v553
  %840 = vmatpush1.bf16.msra.mxu0 %v552
  %841 = vmatprep.subr.bf16.mxu0 %v557
  %842 = vmatpush1.bf16.msra.mxu0 %v556
  %843 = vmatprep.subr.bf16.mxu0 %v561
  %844 = vmatpush1.bf16.msra.mxu0 %v560
  %845 = vmatprep.subr.bf16.mxu0 %v565
  %846 = vmatpush1.bf16.msra.mxu0 %v564
  %847 = vmatprep.mubr.bf16.mxu0 %v189
  %848 = vmatmul.mubr.bf16.gmra.mrb[0].mxu0 %v188
  %v849 = vpop.f32.mrb[0].mxu0
  %v850 = vadd.f32 0.0, %v849
  %v851 = vpop.f32.mrb[0].mxu0
  %v852 = vadd.f32 0.0, %v851
  %v853 = vpop.f32.mrb[0].mxu0
  %v854 = vadd.f32 0.0, %v853
  %v855 = vpop.f32.mrb[0].mxu0
  %v856 = vadd.f32 0.0, %v855
  %857 = vmatprep.mubr.bf16.mxu0 %v193
  %858 = vmatmul.mubr.bf16.gmra.mrb[0].mxu0 %v192
  %v859 = vpop.f32.mrb[0].mxu0
  %v860 = vadd.f32 0.0, %v859
  %v861 = vpop.f32.mrb[0].mxu0
  %v862 = vadd.f32 0.0, %v861
  %v863 = vpop.f32.mrb[0].mxu0
  %v864 = vadd.f32 0.0, %v863
  %v865 = vpop.f32.mrb[0].mxu0
  %v866 = vadd.f32 0.0, %v865
  %867 = vdwg.mxu0
  %868 = vmatprep.subr.bf16.mxu0 %v569
  %869 = vmatpush1.bf16.msra.mxu0 %v568
  %870 = vmatprep.subr.bf16.mxu0 %v573
  %871 = vmatpush1.bf16.msra.mxu0 %v572
  %872 = vmatprep.subr.bf16.mxu0 %v577
  %873 = vmatpush1.bf16.msra.mxu0 %v576
  %874 = vmatprep.subr.bf16.mxu0 %v581
  %875 = vmatpush1.bf16.msra.mxu0 %v580
  %876 = vmatprep.subr.bf16.mxu0 %v585
  %877 = vmatpush1.bf16.msra.mxu0 %v584
  %878 = vmatprep.subr.bf16.mxu0 %v589
  %879 = vmatpush1.bf16.msra.mxu0 %v588
  %880 = vmatprep.subr.bf16.mxu0 %v593
  %881 = vmatpush1.bf16.msra.mxu0 %v592
  %882 = vmatprep.subr.bf16.mxu0 %v597
  %883 = vmatpush1.bf16.msra.mxu0 %v596
  %884 = vmatprep.subr.bf16.mxu0 %v601
  %885 = vmatpush1.bf16.msra.mxu0 %v600
  %886 = vmatprep.subr.bf16.mxu0 0
  %887 = vmatpush1.bf16.msra.mxu0 0
  %888 = vmatprep.subr.bf16.mxu0 0
  %889 = vmatpush1.bf16.msra.mxu0 0
  %890 = vmatprep.subr.bf16.mxu0 0
  %891 = vmatpush1.bf16.msra.mxu0 0
  %892 = vmatprep.subr.bf16.mxu0 0
  %893 = vmatpush1.bf16.msra.mxu0 0
  %894 = vmatprep.subr.bf16.mxu0 0
  %895 = vmatpush1.bf16.msra.mxu0 0
  %896 = vmatprep.subr.bf16.mxu0 0
  %897 = vmatpush1.bf16.msra.mxu0 0
  %898 = vmatprep.subr.bf16.mxu0 0
  %899 = vmatpush1.bf16.msra.mxu0 0
  %900 = vmatprep.mubr.bf16.mxu0 %v704
  %901 = vmatmul.mubr.bf16.gmra.mrb[0].mxu0 %v190
  %v902 = vpop.f32.mrb[0].mxu0
  %v903 = vadd.f32 %v850, %v902
  %v904 = vpop.f32.mrb[0].mxu0
  %v905 = vadd.f32 %v852, %v904
  %v906 = vpop.f32.mrb[0].mxu0
  %v907 = vadd.f32 %v854, %v906
  %v908 = vpop.f32.mrb[0].mxu0
  %v909 = vadd.f32 %v856, %v908
  %910 = vmatprep.mubr.bf16.mxu0 %v707
  %911 = vmatmul.mubr.bf16.gmra.mrb[0].mxu0 %v194
  %v912 = vpop.f32.mrb[0].mxu0
  %v913 = vadd.f32 %v860, %v912
  %v914 = vpop.f32.mrb[0].mxu0
  %v915 = vadd.f32 %v862, %v914
  %v916 = vpop.f32.mrb[0].mxu0
  %v917 = vadd.f32 %v864, %v916
  %v918 = vpop.f32.mrb[0].mxu0
  %v919 = vadd.f32 %v866, %v918
  %920 = vdwg.mxu0
  %v925 = vunpack.c.l.b16 %v26
  %v926 = vunpack.c.l.b16 %v27
  %v927 = vunpack.c.l.b16 %v28
  %v928 = vunpack.c.l.b16 %v29
  %v929 = vpack.c.b16 %v926, %v925
  %v930 = vpack.c.b16 %v928, %v927
  %v957 = vunpack.c.l.b16 %v30
  %v958 = vunpack.c.h.b16 %v30
  %v959 = vunpack.c.l.b16 %v31
  %v960 = vunpack.c.h.b16 %v31
  %v961 = vunpack.c.l.b16 %v32
  %v962 = vunpack.c.h.b16 %v32
  %v963 = vunpack.c.l.b16 %v33
  %v964 = vunpack.c.h.b16 %v33
  %v965 = vunpack.c.l.b16 %v34
  %v966 = vunpack.c.h.b16 %v34
  %v967 = vunpack.c.l.b16 %v35
  %v968 = vunpack.c.h.b16 %v35
  %v969 = vunpack.c.l.b16 %v36
  %v970 = vunpack.c.h.b16 %v36
  %v971 = vunpack.c.l.b16 %v37
  %v972 = vunpack.c.h.b16 %v37
  %v973 = vunpack.c.l.b16 %v38
  %v974 = vunpack.c.h.b16 %v38
  %v975 = vunpack.c.l.b16 %v39
  %v976 = vunpack.c.h.b16 %v39
  %v977 = vunpack.c.l.b16 %v40
  %v978 = vunpack.c.h.b16 %v40
  %v979 = vunpack.c.l.b16 %v41
  %v980 = vunpack.c.h.b16 %v41
  %v981 = vunpack.c.l.b16 %v42
  %v982 = vunpack.c.h.b16 %v42
  %v983 = vunpack.c.l.b16 %v43
  %v984 = vunpack.c.h.b16 %v43
  %v985 = vunpack.c.l.b16 %v44
  %v986 = vunpack.c.h.b16 %v44
  %v987 = vunpack.c.l.b16 %v45
  %v988 = vunpack.c.h.b16 %v45
  %v989 = vunpack.c.l.b16 %v46
  %v990 = vunpack.c.h.b16 %v46
  %v991 = vunpack.c.l.b16 %v47
  %v992 = vunpack.c.h.b16 %v47
  %v993 = vunpack.c.l.b16 %v48
  %v994 = vunpack.c.h.b16 %v48
  %v995 = vunpack.c.l.b16 %v49
  %v996 = vunpack.c.h.b16 %v49
  %v997 = vunpack.c.l.b16 %v50
  %v998 = vunpack.c.h.b16 %v50
  %v999 = vunpack.c.l.b16 %v51
  %v1000 = vunpack.c.h.b16 %v51
  %v1001 = vunpack.c.l.b16 %v52
  %v1002 = vunpack.c.h.b16 %v52
  %v1003 = vunpack.c.l.b16 %v53
  %v1004 = vunpack.c.h.b16 %v53
  %v1005 = vunpack.c.l.b16 %v54
  %v1006 = vunpack.c.h.b16 %v54
  %v1007 = vunpack.c.l.b16 %v55
  %v1008 = vunpack.c.h.b16 %v55
  %v1009 = vpack.c.b16 %v961, %v957
  %v1010 = vpack.c.b16 %v962, %v958
  %v1011 = vpack.c.b16 %v963, %v959
  %v1012 = vpack.c.b16 %v964, %v960
  %v1013 = vpack.c.b16 %v969, %v965
  %v1014 = vpack.c.b16 %v970, %v966
  %v1015 = vpack.c.b16 %v971, %v967
  %v1016 = vpack.c.b16 %v972, %v968
  %v1017 = vpack.c.b16 %v977, %v973
  %v1018 = vpack.c.b16 %v978, %v974
  %v1019 = vpack.c.b16 %v979, %v975
  %v1020 = vpack.c.b16 %v980, %v976
  %v1021 = vpack.c.b16 %v985, %v981
  %v1022 = vpack.c.b16 %v986, %v982
  %v1023 = vpack.c.b16 %v987, %v983
  %v1024 = vpack.c.b16 %v988, %v984
  %v1025 = vpack.c.b16 %v993, %v989
  %v1026 = vpack.c.b16 %v994, %v990
  %v1027 = vpack.c.b16 %v995, %v991
  %v1028 = vpack.c.b16 %v996, %v992
  %v1029 = vpack.c.b16 %v1001, %v997
  %v1030 = vpack.c.b16 %v1002, %v998
  %v1031 = vpack.c.b16 %v1003, %v999
  %v1032 = vpack.c.b16 %v1004, %v1000
  %v1033 = vpack.c.b16 %v1005, %v1005
  %v1034 = vpack.c.b16 %v1006, %v1006
  %v1035 = vpack.c.b16 %v1007, %v1007
  %v1036 = vpack.c.b16 %v1008, %v1008
  %vm1061 = vcmask 818176
  %v1063 = vsel %vm1061, %v929, 0
  %v1066 = vsel %vm1061, %v930, 0
  %vm1068 = vcmask 1041408
  %v1070 = vsel %vm1068, %v1033, 0
  %v1073 = vsel %vm1068, %v1034, 0
  %v1076 = vsel %vm1068, %v1035, 0
  %v1079 = vsel %vm1068, %v1036, 0
  %1081 = vmatprep.subr.bf16.mxu0 %v1010
  %1082 = vmatpush1.bf16.msra.mxu0 %v1009
  %1083 = vmatprep.subr.bf16.mxu0 %v1014
  %1084 = vmatpush1.bf16.msra.mxu0 %v1013
  %1085 = vmatprep.subr.bf16.mxu0 %v1018
  %1086 = vmatpush1.bf16.msra.mxu0 %v1017
  %1087 = vmatprep.subr.bf16.mxu0 %v1022
  %1088 = vmatpush1.bf16.msra.mxu0 %v1021
  %1089 = vmatprep.subr.bf16.mxu0 %v1026
  %1090 = vmatpush1.bf16.msra.mxu0 %v1025
  %1091 = vmatprep.subr.bf16.mxu0 %v1030
  %1092 = vmatpush1.bf16.msra.mxu0 %v1029
  %1093 = vmatprep.subr.bf16.mxu0 %v1073
  %1094 = vmatpush1.bf16.msra.mxu0 %v1070
  %1095 = vmatprep.subr.bf16.mxu0 0
  %1096 = vmatpush1.bf16.msra.mxu0 0
  %1097 = vmatprep.subr.bf16.mxu0 0
  %1098 = vmatpush1.bf16.msra.mxu0 0
  %1099 = vmatprep.subr.bf16.mxu0 0
  %1100 = vmatpush1.bf16.msra.mxu0 0
  %1101 = vmatprep.subr.bf16.mxu0 0
  %1102 = vmatpush1.bf16.msra.mxu0 0
  %1103 = vmatprep.subr.bf16.mxu0 0
  %1104 = vmatpush1.bf16.msra.mxu0 0
  %1105 = vmatprep.subr.bf16.mxu0 0
  %1106 = vmatpush1.bf16.msra.mxu0 0
  %1107 = vmatprep.subr.bf16.mxu0 0
  %1108 = vmatpush1.bf16.msra.mxu0 0
  %1109 = vmatprep.subr.bf16.mxu0 0
  %1110 = vmatpush1.bf16.msra.mxu0 0
  %1111 = vmatprep.subr.bf16.mxu0 0
  %1112 = vmatpush1.bf16.msra.mxu0 0
  %1113 = vmatprep.mubr.bf16.mxu0 0
  %1114 = vmatmul.mubr.bf16.gmra.mrb[0].mxu0 %v1063
  %v1115 = vpop.f32.mrb[0].mxu0
  %v1116 = vadd.f32 %v797, %v1115
  %v1117 = vpop.f32.mrb[0].mxu0
  %v1118 = vadd.f32 %v799, %v1117
  %v1119 = vpop.f32.mrb[0].mxu0
  %v1120 = vadd.f32 %v801, %v1119
  %v1121 = vpop.f32.mrb[0].mxu0
  %v1122 = vadd.f32 %v803, %v1121
  %1123 = vmatprep.mubr.bf16.mxu0 0
  %1124 = vmatmul.mubr.bf16.gmra.mrb[0].mxu0 %v1066
  %v1125 = vpop.f32.mrb[0].mxu0
  %v1126 = vadd.f32 %v807, %v1125
  %v1127 = vpop.f32.mrb[0].mxu0
  %v1128 = vadd.f32 %v809, %v1127
  %v1129 = vpop.f32.mrb[0].mxu0
  %v1130 = vadd.f32 %v811, %v1129
  %v1131 = vpop.f32.mrb[0].mxu0
  %v1132 = vadd.f32 %v813, %v1131
  %1133 = vdwg.mxu0
  %1134 = vmatprep.subr.bf16.mxu0 %v1012
  %1135 = vmatpush1.bf16.msra.mxu0 %v1011
  %1136 = vmatprep.subr.bf16.mxu0 %v1016
  %1137 = vmatpush1.bf16.msra.mxu0 %v1015
  %1138 = vmatprep.subr.bf16.mxu0 %v1020
  %1139 = vmatpush1.bf16.msra.mxu0 %v1019
  %1140 = vmatprep.subr.bf16.mxu0 %v1024
  %1141 = vmatpush1.bf16.msra.mxu0 %v1023
  %1142 = vmatprep.subr.bf16.mxu0 %v1028
  %1143 = vmatpush1.bf16.msra.mxu0 %v1027
  %1144 = vmatprep.subr.bf16.mxu0 %v1032
  %1145 = vmatpush1.bf16.msra.mxu0 %v1031
  %1146 = vmatprep.subr.bf16.mxu0 %v1079
  %1147 = vmatpush1.bf16.msra.mxu0 %v1076
  %1148 = vmatprep.subr.bf16.mxu0 0
  %1149 = vmatpush1.bf16.msra.mxu0 0
  %1150 = vmatprep.subr.bf16.mxu0 0
  %1151 = vmatpush1.bf16.msra.mxu0 0
  %1152 = vmatprep.subr.bf16.mxu0 0
  %1153 = vmatpush1.bf16.msra.mxu0 0
  %1154 = vmatprep.subr.bf16.mxu0 0
  %1155 = vmatpush1.bf16.msra.mxu0 0
  %1156 = vmatprep.subr.bf16.mxu0 0
  %1157 = vmatpush1.bf16.msra.mxu0 0
  %1158 = vmatprep.subr.bf16.mxu0 0
  %1159 = vmatpush1.bf16.msra.mxu0 0
  %1160 = vmatprep.subr.bf16.mxu0 0
  %1161 = vmatpush1.bf16.msra.mxu0 0
  %1162 = vmatprep.subr.bf16.mxu0 0
  %1163 = vmatpush1.bf16.msra.mxu0 0
  %1164 = vmatprep.subr.bf16.mxu0 0
  %1165 = vmatpush1.bf16.msra.mxu0 0
  %1166 = vmatprep.mubr.bf16.mxu0 0
  %1167 = vmatmul.mubr.bf16.gmra.mrb[0].mxu0 %v1063
  %v1168 = vpop.f32.mrb[0].mxu0
  %v1169 = vadd.f32 %v903, %v1168
  %v1170 = vpop.f32.mrb[0].mxu0
  %v1171 = vadd.f32 %v905, %v1170
  %v1172 = vpop.f32.mrb[0].mxu0
  %v1173 = vadd.f32 %v907, %v1172
  %v1174 = vpop.f32.mrb[0].mxu0
  %v1175 = vadd.f32 %v909, %v1174
  %1176 = vmatprep.mubr.bf16.mxu0 0
  %1177 = vmatmul.mubr.bf16.gmra.mrb[0].mxu0 %v1066
  %v1178 = vpop.f32.mrb[0].mxu0
  %v1179 = vadd.f32 %v913, %v1178
  %v1180 = vpop.f32.mrb[0].mxu0
  %v1181 = vadd.f32 %v915, %v1180
  %v1182 = vpop.f32.mrb[0].mxu0
  %v1183 = vadd.f32 %v917, %v1182
  %v1184 = vpop.f32.mrb[0].mxu0
  %v1185 = vadd.f32 %v919, %v1184
  %1186 = vdwg.mxu0
  %v1187 = vld [vmem:[%s4] sm:$0xff]
  %v1188 = vld [vmem:[%s4 + $0x8] sm:$0xff]
  %v1189 = vld [vmem:[%s4 + $0x10] sm:$0xff]
  %v1190 = vld [vmem:[%s4 + $0x18] sm:$0xff]
  %1192 = vset.pattern.permute.xlu0 0
  %1193 = vperm.xlu0 %1192, %v1187
  %v1194 = vpop.permute.xlu0 %1193
  %1197 = vset.pattern.permute.xlu0 0
  %1198 = vperm.xlu0 %1197, %v1188
  %v1199 = vpop.permute.xlu0 %1198
  %1202 = vset.pattern.permute.xlu0 0
  %1203 = vperm.xlu0 %1202, %v1189
  %v1204 = vpop.permute.xlu0 %1203
  %1207 = vset.pattern.permute.xlu0 0
  %1208 = vperm.xlu0 %1207, %v1190
  %v1209 = vpop.permute.xlu0 %1208
  %v1211 = vadd.f32 %v1116, %v1194
  %v1212 = vadd.f32 %v1118, %v1194
  %v1213 = vadd.f32 %v1169, %v1194
  %v1214 = vadd.f32 %v1171, %v1194
  %v1215 = vadd.f32 %v1120, %v1199
  %v1216 = vadd.f32 %v1122, %v1199
  %v1217 = vadd.f32 %v1173, %v1199
  %v1218 = vadd.f32 %v1175, %v1199
  %v1219 = vadd.f32 %v1126, %v1204
  %v1220 = vadd.f32 %v1128, %v1204
  %v1221 = vadd.f32 %v1179, %v1204
  %v1222 = vadd.f32 %v1181, %v1204
  %v1223 = vadd.f32 %v1130, %v1209
  %v1224 = vadd.f32 %v1132, %v1209
  %v1225 = vadd.f32 %v1183, %v1209
  %v1226 = vadd.f32 %v1185, %v1209
  %v1227 = vtanh.pop %v1211
  %v1228 = vtanh.pop %v1212
  %v1229 = vtanh.pop %v1213
  %v1230 = vtanh.pop %v1214
  %v1231 = vtanh.pop %v1215
  %v1232 = vtanh.pop %v1216
  %v1233 = vtanh.pop %v1217
  %v1234 = vtanh.pop %v1218
  %v1235 = vtanh.pop %v1219
  %v1236 = vtanh.pop %v1220
  %v1237 = vtanh.pop %v1221
  %v1238 = vtanh.pop %v1222
  %v1239 = vtanh.pop %v1223
  %v1240 = vtanh.pop %v1224
  %v1241 = vtanh.pop %v1225
  %v1242 = vtanh.pop %v1226
  %v1243 = vmul.f32 %v1235, 0.5
  %v1244 = vmul.f32 %v1236, 0.5
  %v1245 = vmul.f32 %v1237, 0.5
  %v1246 = vmul.f32 %v1238, 0.5
  %v1247 = vmul.f32 %v1239, 0.5
  %v1248 = vmul.f32 %v1240, 0.5
  %v1249 = vmul.f32 %v1241, 0.5
  %v1250 = vmul.f32 %v1242, 0.5
  %v1251 = vmul.f32 %v1243, 1.442695
  %v1252 = vpow.pop %v1251
  %v1253 = vmul.f32 %v1244, 1.442695
  %v1254 = vpow.pop %v1253
  %v1255 = vmul.f32 %v1245, 1.442695
  %v1256 = vpow.pop %v1255
  %v1257 = vmul.f32 %v1246, 1.442695
  %v1258 = vpow.pop %v1257
  %v1259 = vmul.f32 %v1247, 1.442695
  %v1260 = vpow.pop %v1259
  %v1261 = vmul.f32 %v1248, 1.442695
  %v1262 = vpow.pop %v1261
  %v1263 = vmul.f32 %v1249, 1.442695
  %v1264 = vpow.pop %v1263
  %v1265 = vmul.f32 %v1250, 1.442695
  %v1266 = vpow.pop %v1265
  %v1267 = vld [vmem:[%s5] sm:$0xff]
  %v1268 = vld [vmem:[%s5 + $0x8] sm:$0xff]
  %v1269 = vld [vmem:[%s5 + $0x10] sm:$0xff]
  %v1270 = vld [vmem:[%s5 + $0x18] sm:$0xff]
  %v1271 = vld [vmem:[%s5 + $0x20] sm:$0xff]
  %v1272 = vld [vmem:[%s5 + $0x28] sm:$0xff]
  %v1273 = vld [vmem:[%s5 + $0x30] sm:$0xff]
  %v1274 = vld [vmem:[%s5 + $0x38] sm:$0xff]
  %v1275 = vmul.f32 %v1267, 0.1
  %v1276 = vmul.f32 %v1268, 0.1
  %v1277 = vmul.f32 %v1269, 0.1
  %v1278 = vmul.f32 %v1270, 0.1
  %v1279 = vmul.f32 %v1271, 0.1
  %v1280 = vmul.f32 %v1272, 0.1
  %v1281 = vmul.f32 %v1273, 0.1
  %v1282 = vmul.f32 %v1274, 0.1
  %v1283 = vmul.f32 %v1252, %v1275
  %v1284 = vmul.f32 %v1254, %v1276
  %v1285 = vmul.f32 %v1256, %v1277
  %v1286 = vmul.f32 %v1258, %v1278
  %v1287 = vmul.f32 %v1260, %v1279
  %v1288 = vmul.f32 %v1262, %v1280
  %v1289 = vmul.f32 %v1264, %v1281
  %v1290 = vmul.f32 %v1266, %v1282
  %v1291 = vadd.f32 %v1227, %v1283
  %v1292 = vadd.f32 %v1228, %v1284
  %v1293 = vadd.f32 %v1229, %v1285
  %v1294 = vadd.f32 %v1230, %v1286
  %v1295 = vadd.f32 %v1231, %v1287
  %v1296 = vadd.f32 %v1232, %v1288
  %v1297 = vadd.f32 %v1233, %v1289
  %v1298 = vadd.f32 %v1234, %v1290
  %1299 = vst [vmem:[%s6] sm:$0xff] %v1291
  %1300 = vst [vmem:[%s6 + $0x8] sm:$0xff] %v1292
  %1301 = vst [vmem:[%s6 + $0x10] sm:$0xff] %v1293
  %1302 = vst [vmem:[%s6 + $0x18] sm:$0xff] %v1294
  %1303 = vst [vmem:[%s6 + $0x20] sm:$0xff] %v1295
  %1304 = vst [vmem:[%s6 + $0x28] sm:$0xff] %v1296
  %1305 = vst [vmem:[%s6 + $0x30] sm:$0xff] %v1297
  %1306 = vst [vmem:[%s6 + $0x38] sm:$0xff] %v1298
  %v1307 = vadd.f32 %v1235, 1.0
  %v1308 = vadd.f32 %v1236, 1.0
  %v1309 = vadd.f32 %v1237, 1.0
  %v1310 = vadd.f32 %v1238, 1.0
  %v1311 = vadd.f32 %v1239, 1.0
  %v1312 = vadd.f32 %v1240, 1.0
  %v1313 = vadd.f32 %v1241, 1.0
  %v1314 = vadd.f32 %v1242, 1.0
  %v1315 = vmul.f32 %v1227, %v1227
  %v1316 = vmul.f32 %v1228, %v1228
  %v1317 = vmul.f32 %v1229, %v1229
  %v1318 = vmul.f32 %v1230, %v1230
  %v1319 = vmul.f32 %v1231, %v1231
  %v1320 = vmul.f32 %v1232, %v1232
  %v1321 = vmul.f32 %v1233, %v1233
  %v1322 = vmul.f32 %v1234, %v1234
  %v1323 = vsub.f32 %v1307, %v1315
  %v1324 = vsub.f32 %v1308, %v1316
  %v1325 = vsub.f32 %v1309, %v1317
  %v1326 = vsub.f32 %v1310, %v1318
  %v1327 = vsub.f32 %v1311, %v1319
  %v1328 = vsub.f32 %v1312, %v1320
  %v1329 = vsub.f32 %v1313, %v1321
  %v1330 = vsub.f32 %v1314, %v1322
  %v1331 = vmul.f32 %v1252, %v1252
  %v1332 = vmul.f32 %v1254, %v1254
  %v1333 = vmul.f32 %v1256, %v1256
  %v1334 = vmul.f32 %v1258, %v1258
  %v1335 = vmul.f32 %v1260, %v1260
  %v1336 = vmul.f32 %v1262, %v1262
  %v1337 = vmul.f32 %v1264, %v1264
  %v1338 = vmul.f32 %v1266, %v1266
  %v1339 = vsub.f32 %v1323, %v1331
  %v1340 = vsub.f32 %v1324, %v1332
  %v1341 = vsub.f32 %v1325, %v1333
  %v1342 = vsub.f32 %v1326, %v1334
  %v1343 = vsub.f32 %v1327, %v1335
  %v1344 = vsub.f32 %v1328, %v1336
  %v1345 = vsub.f32 %v1329, %v1337
  %v1346 = vsub.f32 %v1330, %v1338
  %v1347 = vadd.f32 %v1339, %v1343
  %v1348 = vrot.slane %v1347, 4
  %v1349 = vadd.f32 %v1347, %v1348
  %v1350 = vrot.slane %v1349, 2
  %v1351 = vadd.f32 %v1349, %v1350
  %v1352 = vrot.slane %v1351, 1
  %v1353 = vadd.f32 %v1351, %v1352
  %v1354 = vadd.f32 %v1340, %v1344
  %v1355 = vrot.slane %v1354, 4
  %v1356 = vadd.f32 %v1354, %v1355
  %v1357 = vrot.slane %v1356, 2
  %v1358 = vadd.f32 %v1356, %v1357
  %v1359 = vrot.slane %v1358, 1
  %v1360 = vadd.f32 %v1358, %v1359
  %v1361 = vadd.f32 %v1341, %v1345
  %v1362 = vrot.slane %v1361, 4
  %v1363 = vadd.f32 %v1361, %v1362
  %v1364 = vrot.slane %v1363, 2
  %v1365 = vadd.f32 %v1363, %v1364
  %v1366 = vrot.slane %v1365, 1
  %v1367 = vadd.f32 %v1365, %v1366
  %v1368 = vadd.f32 %v1342, %v1346
  %v1369 = vrot.slane %v1368, 4
  %v1370 = vadd.f32 %v1368, %v1369
  %v1371 = vrot.slane %v1370, 2
  %v1372 = vadd.f32 %v1370, %v1371
  %v1373 = vrot.slane %v1372, 1
  %v1374 = vadd.f32 %v1372, %v1373
  %v1379 = vcombine.low %v1353, %v1360
  %v1380 = vcombine.low %v1367, %v1374
  %v1382 = vunpack.c.l.s4 1966171168
  %v1383 = vunpack.c.0.s8 %v1382
  %v1384 = vlaneseq
  %v1385 = vshrl.u32 %v1384, 7
  %v1386 = vsub.s32 %v1383, %v1385
  %v1387 = vrot.slane %v1379, %v1386
  %v1389 = vunpack.c.l.s4 1966171168
  %v1390 = vunpack.c.0.s8 %v1389
  %v1391 = vlaneseq
  %v1392 = vshrl.u32 %v1391, 7
  %v1393 = vsub.s32 %v1390, %v1392
  %v1394 = vrot.slane %v1380, %v1393
  %v1395 = vcombine.low %v1387, %v1394
  %v1397 = vunpack.c.l.s4 1966171168
  %v1398 = vunpack.c.0.s8 %v1397
  %v1399 = vlaneseq
  %v1400 = vshrl.u32 %v1399, 7
  %v1401 = vsub.s32 %v1398, %v1400
  %v1402 = vrot.slane %v1395, %v1401
  %v1404 = vlaneseq
  %vm1405 = vcmp.ge.s32.totalorder %v1404, 0
  %vm1406 = vcmp.lt.s32.totalorder %v1404, 512
  %vm1407 = vmand %vm1405, %vm1406
  %1408 = vst.msk [vmem:[%s7] sm:$0xf] %vm1407, %v1402
  // Predicated region
  $region26: #{full_bayesian_dense_block.6} parent=0 // pred_check
    _
  $region27: #{full_bayesian_dense_block.6} parent=0 // pred_check_branch
    %1410 = sbr.rel (0) target = $region29
  $region28: #{full_bayesian_dense_block.6} parent=0 // pred_region
    _
  $region29: #{full_bayesian_dense_block.6} parent=0 // pred_fallthru
    _
  // Predicated region
  $region30: #{full_bayesian_dense_block.6} parent=0 // pred_check
    _
  $region31: #{full_bayesian_dense_block.6} parent=0 // pred_check_branch
    %1412 = sbr.rel (0) target = $region33
  $region32: #{full_bayesian_dense_block.6} parent=0 // pred_region
    _
  $region33: #{full_bayesian_dense_block.6} parent=0 // pred_fallthru
    _
  // Predicated region
  $region34: #{full_bayesian_dense_block.6} parent=0 // pred_check
    _
  $region35: #{full_bayesian_dense_block.6} parent=0 // pred_check_branch
    %1414 = sbr.rel (0) target = $region37
  $region36: #{full_bayesian_dense_block.6} parent=0 // pred_region
    _
  $region37: #{full_bayesian_dense_block.6} parent=0 // pred_fallthru
    _
  // Predicated region
  $region38: #{full_bayesian_dense_block.6} parent=0 // pred_check
    _
  $region39: #{full_bayesian_dense_block.6} parent=0 // pred_check_branch
    %1416 = sbr.rel (0) target = $region41
  $region40: #{full_bayesian_dense_block.6} parent=0 // pred_region
    _
  $region41: #{full_bayesian_dense_block.6} parent=0 // pred_fallthru
    _

// kernel: full_bayesian_dense_block.7
$region0: #{full_bayesian_dense_block.7}
  #allocation0 [shape = 'u32[]', space=smem, size = 0x4, offset = 0x4, fixed_abs, tag = 'smem constant byte address 0x4 - core index']
  #allocation1 [shape = 'u32[144,128]{1,0:T(1,128)}', space=vmem, size = 0x12000, scoped, tag = 'internal scratch']
  %s0 = inlined_call_operand.vmem [shape: bf16[32,512], index: 0, kind: input, shape index: {}]
  %s1 = inlined_call_operand.vmem [shape: bf16[32,32], index: 1, kind: input, shape index: {}]
  %s2 = inlined_call_operand.vmem [shape: f32[32,1], index: 2, kind: input, shape index: {}]
  %s3 = inlined_call_operand.vmem [shape: f32[16,512], index: 3, kind: input, shape index: {}]
  %s4 = inlined_call_operand.vmem [shape: f32[16,512], index: 4, kind: output, shape index: {0}]
  %s5 = inlined_call_operand.vmem [shape: f32[1,1,512], index: 5, kind: output, shape index: {1}]
  %6 = xla_tuple %s4, %s5
  %s7 = sld [smem:[#allocation0]]
  $region34: #{full_bayesian_dense_block.7} parent=0
    _
  %s9 = ssub.s32 1, %s7
  %s10 = scalar_select 0, %s9, %s7
  // Predicated region
  $region2: #{full_bayesian_dense_block.7} parent=0 // pred_check
    _
  $region3: #{full_bayesian_dense_block.7} parent=0 // pred_check_branch
    %12 = sbr.rel (0) target = $region5
  $region4: #{full_bayesian_dense_block.7} parent=0 // pred_region
    _
  $region5: #{full_bayesian_dense_block.7} parent=0 // pred_fallthru
    _
  // Predicated region
  $region6: #{full_bayesian_dense_block.7} parent=0 // pred_check
    _
  $region7: #{full_bayesian_dense_block.7} parent=0 // pred_check_branch
    %14 = sbr.rel (0) target = $region9
  $region8: #{full_bayesian_dense_block.7} parent=0 // pred_region
    _
  $region9: #{full_bayesian_dense_block.7} parent=0 // pred_fallthru
    _
  // Predicated region
  $region10: #{full_bayesian_dense_block.7} parent=0 // pred_check
    _
  $region11: #{full_bayesian_dense_block.7} parent=0 // pred_check_branch
    %16 = sbr.rel (0) target = $region13
  $region12: #{full_bayesian_dense_block.7} parent=0 // pred_region
    _
  $region13: #{full_bayesian_dense_block.7} parent=0 // pred_fallthru
    _
  // Predicated region
  $region14: #{full_bayesian_dense_block.7} parent=0 // pred_check
    _
  $region15: #{full_bayesian_dense_block.7} parent=0 // pred_check_branch
    %18 = sbr.rel (0) target = $region17
  $region16: #{full_bayesian_dense_block.7} parent=0 // pred_region
    _
  $region17: #{full_bayesian_dense_block.7} parent=0 // pred_fallthru
    _
  %v20 = vld [vmem:[%s1] sm:$0xf]
  %v21 = vld [vmem:[%s1 + $0x4] sm:$0xf]
  %v22 = vld [vmem:[%s1 + $0x8] sm:$0xf]
  %v23 = vld [vmem:[%s1 + $0xc] sm:$0xf]
  %v24 = vld [vmem:[%s0] sm:$0xff]
  %v25 = vld [vmem:[%s0 + $0x8] sm:$0xff]
  %v26 = vld [vmem:[%s0 + $0x10] sm:$0xff]
  %v27 = vld [vmem:[%s0 + $0x18] sm:$0xff]
  %v28 = vld [vmem:[%s0 + $0x20] sm:$0xff]
  %v29 = vld [vmem:[%s0 + $0x28] sm:$0xff]
  %v30 = vld [vmem:[%s0 + $0x30] sm:$0xff]
  %v31 = vld [vmem:[%s0 + $0x38] sm:$0xff]
  %v32 = vld [vmem:[%s2] sm:$0xff]
  %v33 = vld [vmem:[%s2 + $0x8] sm:$0xff]
  %v34 = vld [vmem:[%s2 + $0x10] sm:$0xff]
  %v35 = vld [vmem:[%s2 + $0x18] sm:$0xff]
  %37 = vset.pattern.permute.xlu0 0
  %38 = vperm.xlu0 %37, %v32
  %v39 = vpop.permute.xlu0 %38
  %42 = vset.pattern.permute.xlu0 0
  %43 = vperm.xlu0 %42, %v33
  %v44 = vpop.permute.xlu0 %43
  %47 = vset.pattern.permute.xlu0 0
  %48 = vperm.xlu0 %47, %v34
  %v49 = vpop.permute.xlu0 %48
  %52 = vset.pattern.permute.xlu0 0
  %53 = vperm.xlu0 %52, %v35
  %v54 = vpop.permute.xlu0 %53
  %v60 = vunpack.c.l.b16 %v20
  %v61 = vunpack.c.l.b16 %v21
  %v62 = vunpack.c.l.b16 %v22
  %v63 = vunpack.c.l.b16 %v23
  %v64 = vpack.c.b16 %v61, %v60
  %v65 = vpack.c.b16 %v63, %v62
  %v74 = vunpack.c.l.b16 %v24
  %v75 = vunpack.c.h.b16 %v24
  %v76 = vunpack.c.l.b16 %v25
  %v77 = vunpack.c.h.b16 %v25
  %v78 = vunpack.c.l.b16 %v26
  %v79 = vunpack.c.h.b16 %v26
  %v80 = vunpack.c.l.b16 %v27
  %v81 = vunpack.c.h.b16 %v27
  %v82 = vunpack.c.l.b16 %v28
  %v83 = vunpack.c.h.b16 %v28
  %v84 = vunpack.c.l.b16 %v29
  %v85 = vunpack.c.h.b16 %v29
  %v86 = vunpack.c.l.b16 %v30
  %v87 = vunpack.c.h.b16 %v30
  %v88 = vunpack.c.l.b16 %v31
  %v89 = vunpack.c.h.b16 %v31
  %v90 = vpack.c.b16 %v78, %v74
  %v91 = vpack.c.b16 %v79, %v75
  %v92 = vpack.c.b16 %v80, %v76
  %v93 = vpack.c.b16 %v81, %v77
  %v94 = vpack.c.b16 %v86, %v82
  %v95 = vpack.c.b16 %v87, %v83
  %v96 = vpack.c.b16 %v88, %v84
  %v97 = vpack.c.b16 %v89, %v85
  %vm106 = vcmask 261120
  %v108 = vsel %vm106, %v64, 0
  %v111 = vsel %vm106, %v65, 0
  %113 = vmatprep.subr.bf16.mxu0 %v91
  %114 = vmatpush1.bf16.msra.mxu0 %v90
  %115 = vmatprep.subr.bf16.mxu0 %v95
  %116 = vmatpush1.bf16.msra.mxu0 %v94
  %117 = vmatprep.subr.bf16.mxu0 0
  %118 = vmatpush1.bf16.msra.mxu0 0
  %119 = vmatprep.subr.bf16.mxu0 0
  %120 = vmatpush1.bf16.msra.mxu0 0
  %121 = vmatprep.subr.bf16.mxu0 0
  %122 = vmatpush1.bf16.msra.mxu0 0
  %123 = vmatprep.subr.bf16.mxu0 0
  %124 = vmatpush1.bf16.msra.mxu0 0
  %125 = vmatprep.subr.bf16.mxu0 0
  %126 = vmatpush1.bf16.msra.mxu0 0
  %127 = vmatprep.subr.bf16.mxu0 0
  %128 = vmatpush1.bf16.msra.mxu0 0
  %129 = vmatprep.subr.bf16.mxu0 0
  %130 = vmatpush1.bf16.msra.mxu0 0
  %131 = vmatprep.subr.bf16.mxu0 0
  %132 = vmatpush1.bf16.msra.mxu0 0
  %133 = vmatprep.subr.bf16.mxu0 0
  %134 = vmatpush1.bf16.msra.mxu0 0
  %135 = vmatprep.subr.bf16.mxu0 0
  %136 = vmatpush1.bf16.msra.mxu0 0
  %137 = vmatprep.subr.bf16.mxu0 0
  %138 = vmatpush1.bf16.msra.mxu0 0
  %139 = vmatprep.subr.bf16.mxu0 0
  %140 = vmatpush1.bf16.msra.mxu0 0
  %141 = vmatprep.subr.bf16.mxu0 0
  %142 = vmatpush1.bf16.msra.mxu0 0
  %143 = vmatprep.subr.bf16.mxu0 0
  %144 = vmatpush1.bf16.msra.mxu0 0
  %145 = vmatprep.mubr.bf16.mxu0 0
  %146 = vmatmul.mubr.bf16.gmra.mrb[0].mxu0 %v108
  %v147 = vpop.f32.mrb[0].mxu0
  %v148 = vadd.f32 %v39, %v147
  %v149 = vpop.f32.mrb[0].mxu0
  %v150 = vadd.f32 %v39, %v149
  %v151 = vpop.f32.mrb[0].mxu0
  %v152 = vadd.f32 %v44, %v151
  %v153 = vpop.f32.mrb[0].mxu0
  %v154 = vadd.f32 %v44, %v153
  %155 = vmatprep.mubr.bf16.mxu0 0
  %156 = vmatmul.mubr.bf16.gmra.mrb[0].mxu0 %v111
  %v157 = vpop.f32.mrb[0].mxu0
  %v158 = vadd.f32 %v49, %v157
  %v159 = vpop.f32.mrb[0].mxu0
  %v160 = vadd.f32 %v49, %v159
  %v161 = vpop.f32.mrb[0].mxu0
  %v162 = vadd.f32 %v54, %v161
  %v163 = vpop.f32.mrb[0].mxu0
  %v164 = vadd.f32 %v54, %v163
  %165 = vdwg.mxu0
  %166 = vmatprep.subr.bf16.mxu0 %v93
  %167 = vmatpush1.bf16.msra.mxu0 %v92
  %168 = vmatprep.subr.bf16.mxu0 %v97
  %169 = vmatpush1.bf16.msra.mxu0 %v96
  %170 = vmatprep.subr.bf16.mxu0 0
  %171 = vmatpush1.bf16.msra.mxu0 0
  %172 = vmatprep.subr.bf16.mxu0 0
  %173 = vmatpush1.bf16.msra.mxu0 0
  %174 = vmatprep.subr.bf16.mxu0 0
  %175 = vmatpush1.bf16.msra.mxu0 0
  %176 = vmatprep.subr.bf16.mxu0 0
  %177 = vmatpush1.bf16.msra.mxu0 0
  %178 = vmatprep.subr.bf16.mxu0 0
  %179 = vmatpush1.bf16.msra.mxu0 0
  %180 = vmatprep.subr.bf16.mxu0 0
  %181 = vmatpush1.bf16.msra.mxu0 0
  %182 = vmatprep.subr.bf16.mxu0 0
  %183 = vmatpush1.bf16.msra.mxu0 0
  %184 = vmatprep.subr.bf16.mxu0 0
  %185 = vmatpush1.bf16.msra.mxu0 0
  %186 = vmatprep.subr.bf16.mxu0 0
  %187 = vmatpush1.bf16.msra.mxu0 0
  %188 = vmatprep.subr.bf16.mxu0 0
  %189 = vmatpush1.bf16.msra.mxu0 0
  %190 = vmatprep.subr.bf16.mxu0 0
  %191 = vmatpush1.bf16.msra.mxu0 0
  %192 = vmatprep.subr.bf16.mxu0 0
  %193 = vmatpush1.bf16.msra.mxu0 0
  %194 = vmatprep.subr.bf16.mxu0 0
  %195 = vmatpush1.bf16.msra.mxu0 0
  %196 = vmatprep.subr.bf16.mxu0 0
  %197 = vmatpush1.bf16.msra.mxu0 0
  %198 = vmatprep.mubr.bf16.mxu0 0
  %199 = vmatmul.mubr.bf16.gmra.mrb[0].mxu0 %v108
  %v200 = vpop.f32.mrb[0].mxu0
  %v201 = vadd.f32 %v39, %v200
  %v202 = vpop.f32.mrb[0].mxu0
  %v203 = vadd.f32 %v39, %v202
  %v204 = vpop.f32.mrb[0].mxu0
  %v205 = vadd.f32 %v44, %v204
  %v206 = vpop.f32.mrb[0].mxu0
  %v207 = vadd.f32 %v44, %v206
  %208 = vmatprep.mubr.bf16.mxu0 0
  %209 = vmatmul.mubr.bf16.gmra.mrb[0].mxu0 %v111
  %v210 = vpop.f32.mrb[0].mxu0
  %v211 = vadd.f32 %v49, %v210
  %v212 = vpop.f32.mrb[0].mxu0
  %v213 = vadd.f32 %v49, %v212
  %v214 = vpop.f32.mrb[0].mxu0
  %v215 = vadd.f32 %v54, %v214
  %v216 = vpop.f32.mrb[0].mxu0
  %v217 = vadd.f32 %v54, %v216
  %218 = vdwg.mxu0
  %v219 = vtanh.pop %v148
  %v220 = vtanh.pop %v150
  %v221 = vtanh.pop %v201
  %v222 = vtanh.pop %v203
  %v223 = vtanh.pop %v152
  %v224 = vtanh.pop %v154
  %v225 = vtanh.pop %v205
  %v226 = vtanh.pop %v207
  %v227 = vtanh.pop %v158
  %v228 = vtanh.pop %v160
  %v229 = vtanh.pop %v211
  %v230 = vtanh.pop %v213
  %v231 = vtanh.pop %v162
  %v232 = vtanh.pop %v164
  %v233 = vtanh.pop %v215
  %v234 = vtanh.pop %v217
  %v235 = vmul.f32 %v227, 0.5
  %v236 = vmul.f32 %v228, 0.5
  %v237 = vmul.f32 %v229, 0.5
  %v238 = vmul.f32 %v230, 0.5
  %v239 = vmul.f32 %v231, 0.5
  %v240 = vmul.f32 %v232, 0.5
  %v241 = vmul.f32 %v233, 0.5
  %v242 = vmul.f32 %v234, 0.5
  %v243 = vmul.f32 %v235, 1.442695
  %v244 = vpow.pop %v243
  %v245 = vmul.f32 %v236, 1.442695
  %v246 = vpow.pop %v245
  %v247 = vmul.f32 %v237, 1.442695
  %v248 = vpow.pop %v247
  %v249 = vmul.f32 %v238, 1.442695
  %v250 = vpow.pop %v249
  %v251 = vmul.f32 %v239, 1.442695
  %v252 = vpow.pop %v251
  %v253 = vmul.f32 %v240, 1.442695
  %v254 = vpow.pop %v253
  %v255 = vmul.f32 %v241, 1.442695
  %v256 = vpow.pop %v255
  %v257 = vmul.f32 %v242, 1.442695
  %v258 = vpow.pop %v257
  %v259 = vld [vmem:[%s3] sm:$0xff]
  %v260 = vld [vmem:[%s3 + $0x8] sm:$0xff]
  %v261 = vld [vmem:[%s3 + $0x10] sm:$0xff]
  %v262 = vld [vmem:[%s3 + $0x18] sm:$0xff]
  %v263 = vld [vmem:[%s3 + $0x20] sm:$0xff]
  %v264 = vld [vmem:[%s3 + $0x28] sm:$0xff]
  %v265 = vld [vmem:[%s3 + $0x30] sm:$0xff]
  %v266 = vld [vmem:[%s3 + $0x38] sm:$0xff]
  %v267 = vmul.f32 %v259, 0.1
  %v268 = vmul.f32 %v260, 0.1
  %v269 = vmul.f32 %v261, 0.1
  %v270 = vmul.f32 %v262, 0.1
  %v271 = vmul.f32 %v263, 0.1
  %v272 = vmul.f32 %v264, 0.1
  %v273 = vmul.f32 %v265, 0.1
  %v274 = vmul.f32 %v266, 0.1
  %v275 = vmul.f32 %v244, %v267
  %v276 = vmul.f32 %v246, %v268
  %v277 = vmul.f32 %v248, %v269
  %v278 = vmul.f32 %v250, %v270
  %v279 = vmul.f32 %v252, %v271
  %v280 = vmul.f32 %v254, %v272
  %v281 = vmul.f32 %v256, %v273
  %v282 = vmul.f32 %v258, %v274
  %v283 = vadd.f32 %v219, %v275
  %v284 = vadd.f32 %v220, %v276
  %v285 = vadd.f32 %v221, %v277
  %v286 = vadd.f32 %v222, %v278
  %v287 = vadd.f32 %v223, %v279
  %v288 = vadd.f32 %v224, %v280
  %v289 = vadd.f32 %v225, %v281
  %v290 = vadd.f32 %v226, %v282
  %291 = vst [vmem:[%s4] sm:$0xff] %v283
  %292 = vst [vmem:[%s4 + $0x8] sm:$0xff] %v284
  %293 = vst [vmem:[%s4 + $0x10] sm:$0xff] %v285
  %294 = vst [vmem:[%s4 + $0x18] sm:$0xff] %v286
  %295 = vst [vmem:[%s4 + $0x20] sm:$0xff] %v287
  %296 = vst [vmem:[%s4 + $0x28] sm:$0xff] %v288
  %297 = vst [vmem:[%s4 + $0x30] sm:$0xff] %v289
  %298 = vst [vmem:[%s4 + $0x38] sm:$0xff] %v290
  %v299 = vadd.f32 %v227, 1.0
  %v300 = vadd.f32 %v228, 1.0
  %v301 = vadd.f32 %v229, 1.0
  %v302 = vadd.f32 %v230, 1.0
  %v303 = vadd.f32 %v231, 1.0
  %v304 = vadd.f32 %v232, 1.0
  %v305 = vadd.f32 %v233, 1.0
  %v306 = vadd.f32 %v234, 1.0
  %v307 = vmul.f32 %v219, %v219
  %v308 = vmul.f32 %v220, %v220
  %v309 = vmul.f32 %v221, %v221
  %v310 = vmul.f32 %v222, %v222
  %v311 = vmul.f32 %v223, %v223
  %v312 = vmul.f32 %v224, %v224
  %v313 = vmul.f32 %v225, %v225
  %v314 = vmul.f32 %v226, %v226
  %v315 = vsub.f32 %v299, %v307
  %v316 = vsub.f32 %v300, %v308
  %v317 = vsub.f32 %v301, %v309
  %v318 = vsub.f32 %v302, %v310
  %v319 = vsub.f32 %v303, %v311
  %v320 = vsub.f32 %v304, %v312
  %v321 = vsub.f32 %v305, %v313
  %v322 = vsub.f32 %v306, %v314
  %v323 = vmul.f32 %v244, %v244
  %v324 = vmul.f32 %v246, %v246
  %v325 = vmul.f32 %v248, %v248
  %v326 = vmul.f32 %v250, %v250
  %v327 = vmul.f32 %v252, %v252
  %v328 = vmul.f32 %v254, %v254
  %v329 = vmul.f32 %v256, %v256
  %v330 = vmul.f32 %v258, %v258
  %v331 = vsub.f32 %v315, %v323
  %v332 = vsub.f32 %v316, %v324
  %v333 = vsub.f32 %v317, %v325
  %v334 = vsub.f32 %v318, %v326
  %v335 = vsub.f32 %v319, %v327
  %v336 = vsub.f32 %v320, %v328
  %v337 = vsub.f32 %v321, %v329
  %v338 = vsub.f32 %v322, %v330
  %v339 = vadd.f32 %v331, %v335
  %v340 = vrot.slane %v339, 4
  %v341 = vadd.f32 %v339, %v340
  %v342 = vrot.slane %v341, 2
  %v343 = vadd.f32 %v341, %v342
  %v344 = vrot.slane %v343, 1
  %v345 = vadd.f32 %v343, %v344
  %v346 = vadd.f32 %v332, %v336
  %v347 = vrot.slane %v346, 4
  %v348 = vadd.f32 %v346, %v347
  %v349 = vrot.slane %v348, 2
  %v350 = vadd.f32 %v348, %v349
  %v351 = vrot.slane %v350, 1
  %v352 = vadd.f32 %v350, %v351
  %v353 = vadd.f32 %v333, %v337
  %v354 = vrot.slane %v353, 4
  %v355 = vadd.f32 %v353, %v354
  %v356 = vrot.slane %v355, 2
  %v357 = vadd.f32 %v355, %v356
  %v358 = vrot.slane %v357, 1
  %v359 = vadd.f32 %v357, %v358
  %v360 = vadd.f32 %v334, %v338
  %v361 = vrot.slane %v360, 4
  %v362 = vadd.f32 %v360, %v361
  %v363 = vrot.slane %v362, 2
  %v364 = vadd.f32 %v362, %v363
  %v365 = vrot.slane %v364, 1
  %v366 = vadd.f32 %v364, %v365
  %v371 = vcombine.low %v345, %v352
  %v372 = vcombine.low %v359, %v366
  %v374 = vunpack.c.l.s4 1966171168
  %v375 = vunpack.c.0.s8 %v374
  %v376 = vlaneseq
  %v377 = vshrl.u32 %v376, 7
  %v378 = vsub.s32 %v375, %v377
  %v379 = vrot.slane %v371, %v378
  %v381 = vunpack.c.l.s4 1966171168
  %v382 = vunpack.c.0.s8 %v381
  %v383 = vlaneseq
  %v384 = vshrl.u32 %v383, 7
  %v385 = vsub.s32 %v382, %v384
  %v386 = vrot.slane %v372, %v385
  %v387 = vcombine.low %v379, %v386
  %v389 = vunpack.c.l.s4 1966171168
  %v390 = vunpack.c.0.s8 %v389
  %v391 = vlaneseq
  %v392 = vshrl.u32 %v391, 7
  %v393 = vsub.s32 %v390, %v392
  %v394 = vrot.slane %v387, %v393
  %v396 = vlaneseq
  %vm397 = vcmp.ge.s32.totalorder %v396, 0
  %vm398 = vcmp.lt.s32.totalorder %v396, 512
  %vm399 = vmand %vm397, %vm398
  %400 = vst.msk [vmem:[%s5] sm:$0xf] %vm399, %v394
  // Predicated region
  $region18: #{full_bayesian_dense_block.7} parent=0 // pred_check
    _
  $region19: #{full_bayesian_dense_block.7} parent=0 // pred_check_branch
    %402 = sbr.rel (0) target = $region21
  $region20: #{full_bayesian_dense_block.7} parent=0 // pred_region
    _
  $region21: #{full_bayesian_dense_block.7} parent=0 // pred_fallthru
    _
  // Predicated region
  $region22: #{full_bayesian_dense_block.7} parent=0 // pred_check
    _
  $region23: #{full_bayesian_dense_block.7} parent=0 // pred_check_branch
    %404 = sbr.rel (0) target = $region25
  $region24: #{full_bayesian_dense_block.7} parent=0 // pred_region
    _
  $region25: #{full_bayesian_dense_block.7} parent=0 // pred_fallthru
    _
  // Predicated region
  $region26: #{full_bayesian_dense_block.7} parent=0 // pred_check
    _
  $region27: #{full_bayesian_dense_block.7} parent=0 // pred_check_branch
    %406 = sbr.rel (0) target = $region29
  $region28: #{full_bayesian_dense_block.7} parent=0 // pred_region
    _
  $region29: #{full_bayesian_dense_block.7} parent=0 // pred_fallthru
    _
  // Predicated region
  $region30: #{full_bayesian_dense_block.7} parent=0 // pred_check
    _
  $region31: #{full_bayesian_dense_block.7} parent=0 // pred_check_branch
    %408 = sbr.rel (0) target = $region33
  $region32: #{full_bayesian_dense_block.7} parent=0 // pred_region
    _
  $region33: #{full_bayesian_dense_block.7} parent=0 // pred_fallthru
    _

</llo_original>
